<compile_context>
chip_gen: v6e
topology: v6e:2x2x1
jax: 0.10.0
libtpu: 0.0.40
codegen_flags: <defaults>
</compile_context>

<pallas_src>
import numpy as np
import jax
import jax.numpy as jnp
from jax import lax
from jax.experimental import pallas as pl
from jax.experimental.pallas import tpu as pltpu


# ------------------------------ tiling helpers ----------------------------- #

def _choose_c_tile(C, bytes_per_chan, budget_bytes=4 << 20):
    """Largest channel tile whose double-buffered block stays under budget."""
    if C * bytes_per_chan <= budget_bytes:
        return C                                   # whole-C block fits easily
    max_tile = max(8, int(budget_bytes // bytes_per_chan))
    max_tile -= max_tile % 8                       # keep sublane-friendly tiles
    for t in range(max_tile, 7, -8):               # multiple of 8 dividing C
        if C % t == 0:
            return t
    return C  # TODO(synk): fall back to raising vmem_limit_bytes for odd C


# ------------------------------- Pallas kernel ----------------------------- #

def _make_spatial_attention_kernel(C, H, W, k, pad, c_tile, chunk):
    HW = H * W
    inv_c = np.float32(1.0 / C)
    n_chunks = c_tile // chunk

    def kernel(x_ref, m_ref, w_ref, o_ref, sum_ref, max_ref):
        # x_ref: (1, c_tile, HW)  input block, native dtype (lane-dense)
        # m_ref: (2k, HW) f32     rows 0..k-1 = row masks, k..2k-1 = col masks
        # w_ref: (2*k*k,) f32     SMEM scalars, [c_in, ky, kx] (0=avg, 1=max)
        # o_ref: (1, 1, HW) f32   output block (lane-dense)
        # sum_ref/max_ref: (1, HW) f32 running channel sum / max (scratch)
        c_step = pl.program_id(1)

        @pl.when(c_step == 0)
        def _init():
            sum_ref[...] = jnp.zeros(sum_ref.shape, jnp.float32)
            max_ref[...] = jnp.full(max_ref.shape, -jnp.inf, jnp.float32)

        # ---- channel reduce: chunked running sum / max (cast in-kernel) ----
        if n_chunks == 1:
            blk = x_ref[0].astype(jnp.float32)                  # (c_tile, HW)
            sum_ref[...] = sum_ref[...] + jnp.sum(blk, axis=0, keepdims=True)
            max_ref[...] = jnp.maximum(max_ref[...],
                                       jnp.max(blk, axis=0, keepdims=True))
        else:
            def body(i, carry):
                s, m = carry
                c0 = pl.multiple_of(i * chunk, chunk)
                blk = x_ref[0, pl.ds(c0, chunk), :].astype(jnp.float32)
                return (s + jnp.sum(blk, axis=0, keepdims=True),
                        jnp.maximum(m, jnp.max(blk, axis=0, keepdims=True)))

            s, m = lax.fori_loop(0, n_chunks, body,
                                 (sum_ref[...], max_ref[...]),
                                 unroll=min(n_chunks, 8))
            sum_ref[...] = s
            max_ref[...] = m

        # ---- last channel tile: k x k conv (shifted MACs) + sigmoid --------
        @pl.when(c_step == pl.num_programs(1) - 1)
        def _finalize():
            avg = sum_ref[...] * inv_c                          # (1, HW)
            mxv = max_ref[...]                                  # (1, HW)

            # Row-shifted + row-masked partials, shared across every kx.
            shifted = []
            for ci, mp in ((0, avg), (1, mxv)):
                for ky in range(k):
                    dy = ky - pad
                    v = mp if dy == 0 else pltpu.roll(
                        mp, shift=(-dy * W) % HW, axis=1)
                    if dy != 0:
                        v = v * m_ref[pl.ds(ky, 1), :]          # row mask
                    shifted.append((ci, ky, v))

            acc = jnp.zeros((1, HW), jnp.float32)
            for kx in range(k):
                dx = kx - pad
                t = jnp.zeros((1, HW), jnp.float32)
                for ci, ky, v in shifted:
                    t = t + w_ref[(ci * k + ky) * k + kx] * v   # SMEM scalar
                if dx != 0:
                    t = pltpu.roll(t, shift=(-dx) % HW, axis=1)
                    t = t * m_ref[pl.ds(k + kx, 1), :]          # col mask
                acc = acc + t

            o_ref[0] = 1.0 / (1.0 + jnp.exp(-acc))              # exact sigmoid

    return kernel


# ---------------------------------- wrapper -------------------------------- #

def spatial_attention_forward(x, conv_w, kernel_size=7):
    """x: (N, C, H, W) any float dtype (PyTorch layout); conv_w: (1, 2, k, k)."""
    assert kernel_size in (3, 7), "kernel size must be 3 or 7"
    k = kernel_size
    pad = 3 if k == 7 else 1
    N, C, H, W = x.shape
    HW = H * W

    # Lane-dense view (free reshape of contiguous NCHW); no dtype cast here.
    x_flat = x.reshape(N, C, HW)

    # Conv weights as flat SMEM scalars (OIHW flatten: [c_in, ky, kx]).
    w_flat = jnp.asarray(conv_w, jnp.float32).reshape(2 * k * k)

    # Static zero-padding masks (0/1 f32), precomputed on host: rows then cols.
    ids = np.arange(HW)
    rows, cols = ids // W, ids % W
    row_masks = np.stack([((rows + (ky - pad)) >= 0) & ((rows + (ky - pad)) < H)
                          for ky in range(k)])
    col_masks = np.stack([((cols + (kx - pad)) >= 0) & ((cols + (kx - pad)) < W)
                          for kx in range(k)])
    masks = jnp.asarray(np.concatenate([row_masks, col_masks], axis=0),
                        jnp.float32)                            # (2k, HW)

    c_tile = _choose_c_tile(C, HW * x.dtype.itemsize)
    chunk = 8 if c_tile % 8 == 0 else c_tile
    n_ct = C // c_tile

    kernel = _make_spatial_attention_kernel(C, H, W, k, pad, c_tile, chunk)
    out_flat = pl.pallas_call(
        kernel,
        out_shape=jax.ShapeDtypeStruct((N, 1, HW), jnp.float32),
        grid=(N, n_ct),
        in_specs=[
            pl.BlockSpec((1, c_tile, HW), lambda n, c: (n, c, 0)),   # x tile
            pl.BlockSpec((2 * k, HW), lambda n, c: (0, 0)),          # masks
            pl.BlockSpec(memory_space=pltpu.MemorySpace.SMEM),       # weights
        ],
        out_specs=pl.BlockSpec((1, 1, HW), lambda n, c: (n, 0, 0)),
        scratch_shapes=[pltpu.VMEM((1, HW), jnp.float32),            # sum
                        pltpu.VMEM((1, HW), jnp.float32)],           # max
        compiler_params=pltpu.CompilerParams(
            dimension_semantics=("parallel", "arbitrary")),
    )(x_flat, masks, w_flat)
    return out_flat.reshape(N, 1, H, W)


# --------------------------- pure-JAX reference ----------------------------- #

def spatial_attention_reference(x, conv_w, kernel_size=7):
    pad = 3 if kernel_size == 7 else 1
    xf = x.astype(jnp.float32)
    avg = jnp.mean(xf, axis=1, keepdims=True)
    mx = jnp.max(xf, axis=1, keepdims=True)
    xin = jnp.concatenate([avg, mx], axis=1)                    # (N, 2, H, W)
    out = lax.conv_general_dilated(
        xin, conv_w.astype(jnp.float32), window_strides=(1, 1),
        padding=[(pad, pad), (pad, pad)],
        dimension_numbers=("NCHW", "OIHW", "NCHW"))
    return jax.nn.sigmoid(out)


# ----------------------------------- main ----------------------------------- #

if __name__ == "__main__":
    N, C, H, W = 2, 4, 16, 16
    key = jax.random.PRNGKey(0)
    kx_key, kw7, kw3 = jax.random.split(key, 3)
    x = jax.random.normal(kx_key, (N, C, H, W), jnp.float32)

    for k_size, wkey in ((7, kw7), (3, kw3)):                   # module default: 7
        conv_w = 0.3 * jax.random.normal(wkey, (1, 2, k_size, k_size), jnp.float32)
        out = jax.block_until_ready(spatial_attention_forward(x, conv_w, k_size))
        ref = spatial_attention_reference(x, conv_w, k_size)
        np.testing.assert_allclose(np.asarray(out), np.asarray(ref),
                                   rtol=1e-4, atol=1e-5)

    print("KERNEL_OK")
</pallas_src>

<mosaic_0001>
module attributes {stable_mosaic.version = 11 : i64} {
  func.func @kernel(%arg0: i32, %arg1: i32, %arg2: memref<1x4x256xf32, #tpu.memory_space<vmem>>, %arg3: memref<14x256xf32, #tpu.memory_space<vmem>>, %arg4: memref<98xf32, #tpu.memory_space<smem>>, %arg5: memref<1x1x256xf32, #tpu.memory_space<vmem>>, %arg6: memref<1x256xf32, #tpu.memory_space<vmem>>, %arg7: memref<1x256xf32, #tpu.memory_space<vmem>>) attributes {dimension_semantics = [#tpu.dimension_semantics<parallel>, #tpu.dimension_semantics<arbitrary>], iteration_bounds = array<i64: 2, 1>, scalar_prefetch = 0 : i64, scratch_operands = 2 : i64, tpu.core_type = #tpu.core_type<tc>, window_params = [{transform_indices = @transform_0, window_bounds = array<i64: 1, 4, 256>}, {pipeline_mode = #tpu.pipeline_mode<synchronous>, transform_indices = @transform_1, window_bounds = array<i64: 14, 256>}, {transform_indices = @transform_2, window_bounds = array<i64: 98>}, {transform_indices = @transform_3, window_bounds = array<i64: 1, 1, 256>}]} {
    %c0_i32 = arith.constant 0 : i32
    %0 = arith.cmpi eq, %arg1, %c0_i32 : i32
    %1 = arith.extui %0 : i1 to i32
    %c0_i32_0 = arith.constant 0 : i32
    %2 = arith.cmpi ne, %1, %c0_i32_0 : i32
    scf.if %2 {
      %cst_14 = arith.constant 0.000000e+00 : f32
      %18 = vector.broadcast %cst_14 : f32 to vector<1x256xf32>
      %c0_15 = arith.constant 0 : index
      %c0_16 = arith.constant 0 : index
      %19 = vector.load %arg6[%c0_15, %c0_16] : memref<1x256xf32, #tpu.memory_space<vmem>>, vector<1x256xf32>
      tpu.vector_store %arg6[%c0_15, %c0_16], %18 {strides = array<i32>} : memref<1x256xf32, #tpu.memory_space<vmem>>, vector<1x256xf32>,
      %cst_17 = arith.constant 0xFF800000 : f32
      %20 = vector.broadcast %cst_17 : f32 to vector<1x256xf32>
      %c0_18 = arith.constant 0 : index
      %c0_19 = arith.constant 0 : index
      %21 = vector.load %arg7[%c0_18, %c0_19] : memref<1x256xf32, #tpu.memory_space<vmem>>, vector<1x256xf32>
      tpu.vector_store %arg7[%c0_18, %c0_19], %20 {strides = array<i32>} : memref<1x256xf32, #tpu.memory_space<vmem>>, vector<1x256xf32>,
    } else {
    }
    %c0 = arith.constant 0 : index
    %c0_1 = arith.constant 0 : index
    %c0_2 = arith.constant 0 : index
    %3 = vector.load %arg2[%c0, %c0_1, %c0_2] : memref<1x4x256xf32, #tpu.memory_space<vmem>>, vector<1x4x256xf32>
    %4 = vector.shape_cast %3 : vector<1x4x256xf32> to vector<4x256xf32>
    %c0_3 = arith.constant 0 : index
    %c0_4 = arith.constant 0 : index
    %5 = vector.load %arg6[%c0_3, %c0_4] : memref<1x256xf32, #tpu.memory_space<vmem>>, vector<1x256xf32>
    %cst = arith.constant dense<0.000000e+00> : vector<256xf32>
    %6 = vector.multi_reduction <add>, %4, %cst [0] : vector<4x256xf32> to vector<256xf32>
    %7 = vector.shape_cast %6 : vector<256xf32> to vector<1x256xf32>
    %8 = arith.addf %5, %7 : vector<1x256xf32>
    %c0_5 = arith.constant 0 : index
    %c0_6 = arith.constant 0 : index
    %9 = vector.load %arg6[%c0_5, %c0_6] : memref<1x256xf32, #tpu.memory_space<vmem>>, vector<1x256xf32>
    tpu.vector_store %arg6[%c0_5, %c0_6], %8 {strides = array<i32>} : memref<1x256xf32, #tpu.memory_space<vmem>>, vector<1x256xf32>,
    %c0_7 = arith.constant 0 : index
    %c0_8 = arith.constant 0 : index
    %10 = vector.load %arg7[%c0_7, %c0_8] : memref<1x256xf32, #tpu.memory_space<vmem>>, vector<1x256xf32>
    %cst_9 = arith.constant dense<0xFF800000> : vector<256xf32>
    %11 = vector.multi_reduction <maximumf>, %4, %cst_9 [0] : vector<4x256xf32> to vector<256xf32>
    %12 = vector.shape_cast %11 : vector<256xf32> to vector<1x256xf32>
    %13 = arith.maximumf %10, %12 : vector<1x256xf32>
    %c0_10 = arith.constant 0 : index
    %c0_11 = arith.constant 0 : index
    %14 = vector.load %arg7[%c0_10, %c0_11] : memref<1x256xf32, #tpu.memory_space<vmem>>, vector<1x256xf32>
    tpu.vector_store %arg7[%c0_10, %c0_11], %13 {strides = array<i32>} : memref<1x256xf32, #tpu.memory_space<vmem>>, vector<1x256xf32>,
    %c0_i32_12 = arith.constant 0 : i32
    %15 = arith.cmpi eq, %arg1, %c0_i32_12 : i32
    %16 = arith.extui %15 : i1 to i32
    %c0_i32_13 = arith.constant 0 : i32
    %17 = arith.cmpi ne, %16, %c0_i32_13 : i32
    scf.if %17 {
      %c0_14 = arith.constant 0 : index
      %c0_15 = arith.constant 0 : index
      %18 = vector.load %arg6[%c0_14, %c0_15] : memref<1x256xf32, #tpu.memory_space<vmem>>, vector<1x256xf32>
      %cst_16 = arith.constant 2.500000e-01 : f32
      %19 = vector.broadcast %cst_16 : f32 to vector<1x256xf32>
      %20 = arith.mulf %18, %19 : vector<1x256xf32>
      %c0_17 = arith.constant 0 : index
      %c0_18 = arith.constant 0 : index
      %21 = vector.load %arg7[%c0_17, %c0_18] : memref<1x256xf32, #tpu.memory_space<vmem>>, vector<1x256xf32>
      %c48_i32 = arith.constant 48 : i32
      %22 = tpu.dynamic_rotate %20 by %c48_i32 dim 1 : vector<1x256xf32>, i32 -> vector<1x256xf32>
      %c0_19 = arith.constant 0 : index
      %c0_20 = arith.constant 0 : index
      %23 = vector.load %arg3[%c0_19, %c0_20] : memref<14x256xf32, #tpu.memory_space<vmem>>, vector<1x256xf32>
      %24 = arith.mulf %22, %23 : vector<1x256xf32>
      %c32_i32 = arith.constant 32 : i32
      %25 = tpu.dynamic_rotate %20 by %c32_i32 dim 1 : vector<1x256xf32>, i32 -> vector<1x256xf32>
      %c1 = arith.constant 1 : index
      %c0_21 = arith.constant 0 : index
      %26 = vector.load %arg3[%c1, %c0_21] : memref<14x256xf32, #tpu.memory_space<vmem>>, vector<1x256xf32>
      %27 = arith.mulf %25, %26 : vector<1x256xf32>
      %c16_i32 = arith.constant 16 : i32
      %28 = tpu.dynamic_rotate %20 by %c16_i32 dim 1 : vector<1x256xf32>, i32 -> vector<1x256xf32>
      %c2 = arith.constant 2 : index
      %c0_22 = arith.constant 0 : index
      %29 = vector.load %arg3[%c2, %c0_22] : memref<14x256xf32, #tpu.memory_space<vmem>>, vector<1x256xf32>
      %30 = arith.mulf %28, %29 : vector<1x256xf32>
      %c240_i32 = arith.constant 240 : i32
      %31 = tpu.dynamic_rotate %20 by %c240_i32 dim 1 : vector<1x256xf32>, i32 -> vector<1x256xf32>
      %c4 = arith.constant 4 : index
      %c0_23 = arith.constant 0 : index
      %32 = vector.load %arg3[%c4, %c0_23] : memref<14x256xf32, #tpu.memory_space<vmem>>, vector<1x256xf32>
      %33 = arith.mulf %31, %32 : vector<1x256xf32>
      %c224_i32 = arith.constant 224 : i32
      %34 = tpu.dynamic_rotate %20 by %c224_i32 dim 1 : vector<1x256xf32>, i32 -> vector<1x256xf32>
      %c5 = arith.constant 5 : index
      %c0_24 = arith.constant 0 : index
      %35 = vector.load %arg3[%c5, %c0_24] : memref<14x256xf32, #tpu.memory_space<vmem>>, vector<1x256xf32>
      %36 = arith.mulf %34, %35 : vector<1x256xf32>
      %c208_i32 = arith.constant 208 : i32
      %37 = tpu.dynamic_rotate %20 by %c208_i32 dim 1 : vector<1x256xf32>, i32 -> vector<1x256xf32>
      %c6 = arith.constant 6 : index
      %c0_25 = arith.constant 0 : index
      %38 = vector.load %arg3[%c6, %c0_25] : memref<14x256xf32, #tpu.memory_space<vmem>>, vector<1x256xf32>
      %39 = arith.mulf %37, %38 : vector<1x256xf32>
      %c48_i32_26 = arith.constant 48 : i32
      %40 = tpu.dynamic_rotate %21 by %c48_i32_26 dim 1 : vector<1x256xf32>, i32 -> vector<1x256xf32>
      %c0_27 = arith.constant 0 : index
      %c0_28 = arith.constant 0 : index
      %41 = vector.load %arg3[%c0_27, %c0_28] : memref<14x256xf32, #tpu.memory_space<vmem>>, vector<1x256xf32>
      %42 = arith.mulf %40, %41 : vector<1x256xf32>
      %c32_i32_29 = arith.constant 32 : i32
      %43 = tpu.dynamic_rotate %21 by %c32_i32_29 dim 1 : vector<1x256xf32>, i32 -> vector<1x256xf32>
      %c1_30 = arith.constant 1 : index
      %c0_31 = arith.constant 0 : index
      %44 = vector.load %arg3[%c1_30, %c0_31] : memref<14x256xf32, #tpu.memory_space<vmem>>, vector<1x256xf32>
      %45 = arith.mulf %43, %44 : vector<1x256xf32>
      %c16_i32_32 = arith.constant 16 : i32
      %46 = tpu.dynamic_rotate %21 by %c16_i32_32 dim 1 : vector<1x256xf32>, i32 -> vector<1x256xf32>
      %c2_33 = arith.constant 2 : index
      %c0_34 = arith.constant 0 : index
      %47 = vector.load %arg3[%c2_33, %c0_34] : memref<14x256xf32, #tpu.memory_space<vmem>>, vector<1x256xf32>
      %48 = arith.mulf %46, %47 : vector<1x256xf32>
      %c240_i32_35 = arith.constant 240 : i32
      %49 = tpu.dynamic_rotate %21 by %c240_i32_35 dim 1 : vector<1x256xf32>, i32 -> vector<1x256xf32>
      %c4_36 = arith.constant 4 : index
      %c0_37 = arith.constant 0 : index
      %50 = vector.load %arg3[%c4_36, %c0_37] : memref<14x256xf32, #tpu.memory_space<vmem>>, vector<1x256xf32>
      %51 = arith.mulf %49, %50 : vector<1x256xf32>
      %c224_i32_38 = arith.constant 224 : i32
      %52 = tpu.dynamic_rotate %21 by %c224_i32_38 dim 1 : vector<1x256xf32>, i32 -> vector<1x256xf32>
      %c5_39 = arith.constant 5 : index
      %c0_40 = arith.constant 0 : index
      %53 = vector.load %arg3[%c5_39, %c0_40] : memref<14x256xf32, #tpu.memory_space<vmem>>, vector<1x256xf32>
      %54 = arith.mulf %52, %53 : vector<1x256xf32>
      %c208_i32_41 = arith.constant 208 : i32
      %55 = tpu.dynamic_rotate %21 by %c208_i32_41 dim 1 : vector<1x256xf32>, i32 -> vector<1x256xf32>
      %c6_42 = arith.constant 6 : index
      %c0_43 = arith.constant 0 : index
      %56 = vector.load %arg3[%c6_42, %c0_43] : memref<14x256xf32, #tpu.memory_space<vmem>>, vector<1x256xf32>
      %57 = arith.mulf %55, %56 : vector<1x256xf32>
      %cst_44 = arith.constant 0.000000e+00 : f32
      %58 = vector.broadcast %cst_44 : f32 to vector<1x256xf32>
      %cst_45 = arith.constant 0.000000e+00 : f32
      %59 = vector.broadcast %cst_45 : f32 to vector<1x256xf32>
      %c0_46 = arith.constant 0 : index
      %60 = memref.load %arg4[%c0_46] : memref<98xf32, #tpu.memory_space<smem>>
      %61 = vector.broadcast %60 : f32 to vector<1x256xf32>
      %62 = arith.mulf %61, %24 : vector<1x256xf32>
      %63 = arith.addf %59, %62 : vector<1x256xf32>
      %c7 = arith.constant 7 : index
      %64 = memref.load %arg4[%c7] : memref<98xf32, #tpu.memory_space<smem>>
      %65 = vector.broadcast %64 : f32 to vector<1x256xf32>
      %66 = arith.mulf %65, %27 : vector<1x256xf32>
      %67 = arith.addf %63, %66 : vector<1x256xf32>
      %c14 = arith.constant 14 : index
      %68 = memref.load %arg4[%c14] : memref<98xf32, #tpu.memory_space<smem>>
      %69 = vector.broadcast %68 : f32 to vector<1x256xf32>
      %70 = arith.mulf %69, %30 : vector<1x256xf32>
      %71 = arith.addf %67, %70 : vector<1x256xf32>
      %c21 = arith.constant 21 : index
      %72 = memref.load %arg4[%c21] : memref<98xf32, #tpu.memory_space<smem>>
      %73 = vector.broadcast %72 : f32 to vector<1x256xf32>
      %74 = arith.mulf %73, %20 : vector<1x256xf32>
      %75 = arith.addf %71, %74 : vector<1x256xf32>
      %c28 = arith.constant 28 : index
      %76 = memref.load %arg4[%c28] : memref<98xf32, #tpu.memory_space<smem>>
      %77 = vector.broadcast %76 : f32 to vector<1x256xf32>
      %78 = arith.mulf %77, %33 : vector<1x256xf32>
      %79 = arith.addf %75, %78 : vector<1x256xf32>
      %c35 = arith.constant 35 : index
      %80 = memref.load %arg4[%c35] : memref<98xf32, #tpu.memory_space<smem>>
      %81 = vector.broadcast %80 : f32 to vector<1x256xf32>
      %82 = arith.mulf %81, %36 : vector<1x256xf32>
      %83 = arith.addf %79, %82 : vector<1x256xf32>
      %c42 = arith.constant 42 : index
      %84 = memref.load %arg4[%c42] : memref<98xf32, #tpu.memory_space<smem>>
      %85 = vector.broadcast %84 : f32 to vector<1x256xf32>
      %86 = arith.mulf %85, %39 : vector<1x256xf32>
      %87 = arith.addf %83, %86 : vector<1x256xf32>
      %c49 = arith.constant 49 : index
      %88 = memref.load %arg4[%c49] : memref<98xf32, #tpu.memory_space<smem>>
      %89 = vector.broadcast %88 : f32 to vector<1x256xf32>
      %90 = arith.mulf %89, %42 : vector<1x256xf32>
      %91 = arith.addf %87, %90 : vector<1x256xf32>
      %c56 = arith.constant 56 : index
      %92 = memref.load %arg4[%c56] : memref<98xf32, #tpu.memory_space<smem>>
      %93 = vector.broadcast %92 : f32 to vector<1x256xf32>
      %94 = arith.mulf %93, %45 : vector<1x256xf32>
      %95 = arith.addf %91, %94 : vector<1x256xf32>
      %c63 = arith.constant 63 : index
      %96 = memref.load %arg4[%c63] : memref<98xf32, #tpu.memory_space<smem>>
      %97 = vector.broadcast %96 : f32 to vector<1x256xf32>
      %98 = arith.mulf %97, %48 : vector<1x256xf32>
      %99 = arith.addf %95, %98 : vector<1x256xf32>
      %c70 = arith.constant 70 : index
      %100 = memref.load %arg4[%c70] : memref<98xf32, #tpu.memory_space<smem>>
      %101 = vector.broadcast %100 : f32 to vector<1x256xf32>
      %102 = arith.mulf %101, %21 : vector<1x256xf32>
      %103 = arith.addf %99, %102 : vector<1x256xf32>
      %c77 = arith.constant 77 : index
      %104 = memref.load %arg4[%c77] : memref<98xf32, #tpu.memory_space<smem>>
      %105 = vector.broadcast %104 : f32 to vector<1x256xf32>
      %106 = arith.mulf %105, %51 : vector<1x256xf32>
      %107 = arith.addf %103, %106 : vector<1x256xf32>
      %c84 = arith.constant 84 : index
      %108 = memref.load %arg4[%c84] : memref<98xf32, #tpu.memory_space<smem>>
      %109 = vector.broadcast %108 : f32 to vector<1x256xf32>
      %110 = arith.mulf %109, %54 : vector<1x256xf32>
      %111 = arith.addf %107, %110 : vector<1x256xf32>
      %c91 = arith.constant 91 : index
      %112 = memref.load %arg4[%c91] : memref<98xf32, #tpu.memory_space<smem>>
      %113 = vector.broadcast %112 : f32 to vector<1x256xf32>
      %114 = arith.mulf %113, %57 : vector<1x256xf32>
      %115 = arith.addf %111, %114 : vector<1x256xf32>
      %c3_i32 = arith.constant 3 : i32
      %116 = tpu.dynamic_rotate %115 by %c3_i32 dim 1 : vector<1x256xf32>, i32 -> vector<1x256xf32>
      %c7_47 = arith.constant 7 : index
      %c0_48 = arith.constant 0 : index
      %117 = vector.load %arg3[%c7_47, %c0_48] : memref<14x256xf32, #tpu.memory_space<vmem>>, vector<1x256xf32>
      %118 = arith.mulf %116, %117 : vector<1x256xf32>
      %119 = arith.addf %58, %118 : vector<1x256xf32>
      %cst_49 = arith.constant 0.000000e+00 : f32
      %120 = vector.broadcast %cst_49 : f32 to vector<1x256xf32>
      %c1_50 = arith.constant 1 : index
      %121 = memref.load %arg4[%c1_50] : memref<98xf32, #tpu.memory_space<smem>>
      %122 = vector.broadcast %121 : f32 to vector<1x256xf32>
      %123 = arith.mulf %122, %24 : vector<1x256xf32>
      %124 = arith.addf %120, %123 : vector<1x256xf32>
      %c8 = arith.constant 8 : index
      %125 = memref.load %arg4[%c8] : memref<98xf32, #tpu.memory_space<smem>>
      %126 = vector.broadcast %125 : f32 to vector<1x256xf32>
      %127 = arith.mulf %126, %27 : vector<1x256xf32>
      %128 = arith.addf %124, %127 : vector<1x256xf32>
      %c15 = arith.constant 15 : index
      %129 = memref.load %arg4[%c15] : memref<98xf32, #tpu.memory_space<smem>>
      %130 = vector.broadcast %129 : f32 to vector<1x256xf32>
      %131 = arith.mulf %130, %30 : vector<1x256xf32>
      %132 = arith.addf %128, %131 : vector<1x256xf32>
      %c22 = arith.constant 22 : index
      %133 = memref.load %arg4[%c22] : memref<98xf32, #tpu.memory_space<smem>>
      %134 = vector.broadcast %133 : f32 to vector<1x256xf32>
      %135 = arith.mulf %134, %20 : vector<1x256xf32>
      %136 = arith.addf %132, %135 : vector<1x256xf32>
      %c29 = arith.constant 29 : index
      %137 = memref.load %arg4[%c29] : memref<98xf32, #tpu.memory_space<smem>>
      %138 = vector.broadcast %137 : f32 to vector<1x256xf32>
      %139 = arith.mulf %138, %33 : vector<1x256xf32>
      %140 = arith.addf %136, %139 : vector<1x256xf32>
      %c36 = arith.constant 36 : index
      %141 = memref.load %arg4[%c36] : memref<98xf32, #tpu.memory_space<smem>>
      %142 = vector.broadcast %141 : f32 to vector<1x256xf32>
      %143 = arith.mulf %142, %36 : vector<1x256xf32>
      %144 = arith.addf %140, %143 : vector<1x256xf32>
      %c43 = arith.constant 43 : index
      %145 = memref.load %arg4[%c43] : memref<98xf32, #tpu.memory_space<smem>>
      %146 = vector.broadcast %145 : f32 to vector<1x256xf32>
      %147 = arith.mulf %146, %39 : vector<1x256xf32>
      %148 = arith.addf %144, %147 : vector<1x256xf32>
      %c50 = arith.constant 50 : index
      %149 = memref.load %arg4[%c50] : memref<98xf32, #tpu.memory_space<smem>>
      %150 = vector.broadcast %149 : f32 to vector<1x256xf32>
      %151 = arith.mulf %150, %42 : vector<1x256xf32>
      %152 = arith.addf %148, %151 : vector<1x256xf32>
      %c57 = arith.constant 57 : index
      %153 = memref.load %arg4[%c57] : memref<98xf32, #tpu.memory_space<smem>>
      %154 = vector.broadcast %153 : f32 to vector<1x256xf32>
      %155 = arith.mulf %154, %45 : vector<1x256xf32>
      %156 = arith.addf %152, %155 : vector<1x256xf32>
      %c64 = arith.constant 64 : index
      %157 = memref.load %arg4[%c64] : memref<98xf32, #tpu.memory_space<smem>>
      %158 = vector.broadcast %157 : f32 to vector<1x256xf32>
      %159 = arith.mulf %158, %48 : vector<1x256xf32>
      %160 = arith.addf %156, %159 : vector<1x256xf32>
      %c71 = arith.constant 71 : index
      %161 = memref.load %arg4[%c71] : memref<98xf32, #tpu.memory_space<smem>>
      %162 = vector.broadcast %161 : f32 to vector<1x256xf32>
      %163 = arith.mulf %162, %21 : vector<1x256xf32>
      %164 = arith.addf %160, %163 : vector<1x256xf32>
      %c78 = arith.constant 78 : index
      %165 = memref.load %arg4[%c78] : memref<98xf32, #tpu.memory_space<smem>>
      %166 = vector.broadcast %165 : f32 to vector<1x256xf32>
      %167 = arith.mulf %166, %51 : vector<1x256xf32>
      %168 = arith.addf %164, %167 : vector<1x256xf32>
      %c85 = arith.constant 85 : index
      %169 = memref.load %arg4[%c85] : memref<98xf32, #tpu.memory_space<smem>>
      %170 = vector.broadcast %169 : f32 to vector<1x256xf32>
      %171 = arith.mulf %170, %54 : vector<1x256xf32>
      %172 = arith.addf %168, %171 : vector<1x256xf32>
      %c92 = arith.constant 92 : index
      %173 = memref.load %arg4[%c92] : memref<98xf32, #tpu.memory_space<smem>>
      %174 = vector.broadcast %173 : f32 to vector<1x256xf32>
      %175 = arith.mulf %174, %57 : vector<1x256xf32>
      %176 = arith.addf %172, %175 : vector<1x256xf32>
      %c2_i32 = arith.constant 2 : i32
      %177 = tpu.dynamic_rotate %176 by %c2_i32 dim 1 : vector<1x256xf32>, i32 -> vector<1x256xf32>
      %c8_51 = arith.constant 8 : index
      %c0_52 = arith.constant 0 : index
      %178 = vector.load %arg3[%c8_51, %c0_52] : memref<14x256xf32, #tpu.memory_space<vmem>>, vector<1x256xf32>
      %179 = arith.mulf %177, %178 : vector<1x256xf32>
      %180 = arith.addf %119, %179 : vector<1x256xf32>
      %cst_53 = arith.constant 0.000000e+00 : f32
      %181 = vector.broadcast %cst_53 : f32 to vector<1x256xf32>
      %c2_54 = arith.constant 2 : index
      %182 = memref.load %arg4[%c2_54] : memref<98xf32, #tpu.memory_space<smem>>
      %183 = vector.broadcast %182 : f32 to vector<1x256xf32>
      %184 = arith.mulf %183, %24 : vector<1x256xf32>
      %185 = arith.addf %181, %184 : vector<1x256xf32>
      %c9 = arith.constant 9 : index
      %186 = memref.load %arg4[%c9] : memref<98xf32, #tpu.memory_space<smem>>
      %187 = vector.broadcast %186 : f32 to vector<1x256xf32>
      %188 = arith.mulf %187, %27 : vector<1x256xf32>
      %189 = arith.addf %185, %188 : vector<1x256xf32>
      %c16 = arith.constant 16 : index
      %190 = memref.load %arg4[%c16] : memref<98xf32, #tpu.memory_space<smem>>
      %191 = vector.broadcast %190 : f32 to vector<1x256xf32>
      %192 = arith.mulf %191, %30 : vector<1x256xf32>
      %193 = arith.addf %189, %192 : vector<1x256xf32>
      %c23 = arith.constant 23 : index
      %194 = memref.load %arg4[%c23] : memref<98xf32, #tpu.memory_space<smem>>
      %195 = vector.broadcast %194 : f32 to vector<1x256xf32>
      %196 = arith.mulf %195, %20 : vector<1x256xf32>
      %197 = arith.addf %193, %196 : vector<1x256xf32>
      %c30 = arith.constant 30 : index
      %198 = memref.load %arg4[%c30] : memref<98xf32, #tpu.memory_space<smem>>
      %199 = vector.broadcast %198 : f32 to vector<1x256xf32>
      %200 = arith.mulf %199, %33 : vector<1x256xf32>
      %201 = arith.addf %197, %200 : vector<1x256xf32>
      %c37 = arith.constant 37 : index
      %202 = memref.load %arg4[%c37] : memref<98xf32, #tpu.memory_space<smem>>
      %203 = vector.broadcast %202 : f32 to vector<1x256xf32>
      %204 = arith.mulf %203, %36 : vector<1x256xf32>
      %205 = arith.addf %201, %204 : vector<1x256xf32>
      %c44 = arith.constant 44 : index
      %206 = memref.load %arg4[%c44] : memref<98xf32, #tpu.memory_space<smem>>
      %207 = vector.broadcast %206 : f32 to vector<1x256xf32>
      %208 = arith.mulf %207, %39 : vector<1x256xf32>
      %209 = arith.addf %205, %208 : vector<1x256xf32>
      %c51 = arith.constant 51 : index
      %210 = memref.load %arg4[%c51] : memref<98xf32, #tpu.memory_space<smem>>
      %211 = vector.broadcast %210 : f32 to vector<1x256xf32>
      %212 = arith.mulf %211, %42 : vector<1x256xf32>
      %213 = arith.addf %209, %212 : vector<1x256xf32>
      %c58 = arith.constant 58 : index
      %214 = memref.load %arg4[%c58] : memref<98xf32, #tpu.memory_space<smem>>
      %215 = vector.broadcast %214 : f32 to vector<1x256xf32>
      %216 = arith.mulf %215, %45 : vector<1x256xf32>
      %217 = arith.addf %213, %216 : vector<1x256xf32>
      %c65 = arith.constant 65 : index
      %218 = memref.load %arg4[%c65] : memref<98xf32, #tpu.memory_space<smem>>
      %219 = vector.broadcast %218 : f32 to vector<1x256xf32>
      %220 = arith.mulf %219, %48 : vector<1x256xf32>
      %221 = arith.addf %217, %220 : vector<1x256xf32>
      %c72 = arith.constant 72 : index
      %222 = memref.load %arg4[%c72] : memref<98xf32, #tpu.memory_space<smem>>
      %223 = vector.broadcast %222 : f32 to vector<1x256xf32>
      %224 = arith.mulf %223, %21 : vector<1x256xf32>
      %225 = arith.addf %221, %224 : vector<1x256xf32>
      %c79 = arith.constant 79 : index
      %226 = memref.load %arg4[%c79] : memref<98xf32, #tpu.memory_space<smem>>
      %227 = vector.broadcast %226 : f32 to vector<1x256xf32>
      %228 = arith.mulf %227, %51 : vector<1x256xf32>
      %229 = arith.addf %225, %228 : vector<1x256xf32>
      %c86 = arith.constant 86 : index
      %230 = memref.load %arg4[%c86] : memref<98xf32, #tpu.memory_space<smem>>
      %231 = vector.broadcast %230 : f32 to vector<1x256xf32>
      %232 = arith.mulf %231, %54 : vector<1x256xf32>
      %233 = arith.addf %229, %232 : vector<1x256xf32>
      %c93 = arith.constant 93 : index
      %234 = memref.load %arg4[%c93] : memref<98xf32, #tpu.memory_space<smem>>
      %235 = vector.broadcast %234 : f32 to vector<1x256xf32>
      %236 = arith.mulf %235, %57 : vector<1x256xf32>
      %237 = arith.addf %233, %236 : vector<1x256xf32>
      %c1_i32 = arith.constant 1 : i32
      %238 = tpu.dynamic_rotate %237 by %c1_i32 dim 1 : vector<1x256xf32>, i32 -> vector<1x256xf32>
      %c9_55 = arith.constant 9 : index
      %c0_56 = arith.constant 0 : index
      %239 = vector.load %arg3[%c9_55, %c0_56] : memref<14x256xf32, #tpu.memory_space<vmem>>, vector<1x256xf32>
      %240 = arith.mulf %238, %239 : vector<1x256xf32>
      %241 = arith.addf %180, %240 : vector<1x256xf32>
      %cst_57 = arith.constant 0.000000e+00 : f32
      %242 = vector.broadcast %cst_57 : f32 to vector<1x256xf32>
      %c3 = arith.constant 3 : index
      %243 = memref.load %arg4[%c3] : memref<98xf32, #tpu.memory_space<smem>>
      %244 = vector.broadcast %243 : f32 to vector<1x256xf32>
      %245 = arith.mulf %244, %24 : vector<1x256xf32>
      %246 = arith.addf %242, %245 : vector<1x256xf32>
      %c10 = arith.constant 10 : index
      %247 = memref.load %arg4[%c10] : memref<98xf32, #tpu.memory_space<smem>>
      %248 = vector.broadcast %247 : f32 to vector<1x256xf32>
      %249 = arith.mulf %248, %27 : vector<1x256xf32>
      %250 = arith.addf %246, %249 : vector<1x256xf32>
      %c17 = arith.constant 17 : index
      %251 = memref.load %arg4[%c17] : memref<98xf32, #tpu.memory_space<smem>>
      %252 = vector.broadcast %251 : f32 to vector<1x256xf32>
      %253 = arith.mulf %252, %30 : vector<1x256xf32>
      %254 = arith.addf %250, %253 : vector<1x256xf32>
      %c24 = arith.constant 24 : index
      %255 = memref.load %arg4[%c24] : memref<98xf32, #tpu.memory_space<smem>>
      %256 = vector.broadcast %255 : f32 to vector<1x256xf32>
      %257 = arith.mulf %256, %20 : vector<1x256xf32>
      %258 = arith.addf %254, %257 : vector<1x256xf32>
      %c31 = arith.constant 31 : index
      %259 = memref.load %arg4[%c31] : memref<98xf32, #tpu.memory_space<smem>>
      %260 = vector.broadcast %259 : f32 to vector<1x256xf32>
      %261 = arith.mulf %260, %33 : vector<1x256xf32>
      %262 = arith.addf %258, %261 : vector<1x256xf32>
      %c38 = arith.constant 38 : index
      %263 = memref.load %arg4[%c38] : memref<98xf32, #tpu.memory_space<smem>>
      %264 = vector.broadcast %263 : f32 to vector<1x256xf32>
      %265 = arith.mulf %264, %36 : vector<1x256xf32>
      %266 = arith.addf %262, %265 : vector<1x256xf32>
      %c45 = arith.constant 45 : index
      %267 = memref.load %arg4[%c45] : memref<98xf32, #tpu.memory_space<smem>>
      %268 = vector.broadcast %267 : f32 to vector<1x256xf32>
      %269 = arith.mulf %268, %39 : vector<1x256xf32>
      %270 = arith.addf %266, %269 : vector<1x256xf32>
      %c52 = arith.constant 52 : index
      %271 = memref.load %arg4[%c52] : memref<98xf32, #tpu.memory_space<smem>>
      %272 = vector.broadcast %271 : f32 to vector<1x256xf32>
      %273 = arith.mulf %272, %42 : vector<1x256xf32>
      %274 = arith.addf %270, %273 : vector<1x256xf32>
      %c59 = arith.constant 59 : index
      %275 = memref.load %arg4[%c59] : memref<98xf32, #tpu.memory_space<smem>>
      %276 = vector.broadcast %275 : f32 to vector<1x256xf32>
      %277 = arith.mulf %276, %45 : vector<1x256xf32>
      %278 = arith.addf %274, %277 : vector<1x256xf32>
      %c66 = arith.constant 66 : index
      %279 = memref.load %arg4[%c66] : memref<98xf32, #tpu.memory_space<smem>>
      %280 = vector.broadcast %279 : f32 to vector<1x256xf32>
      %281 = arith.mulf %280, %48 : vector<1x256xf32>
      %282 = arith.addf %278, %281 : vector<1x256xf32>
      %c73 = arith.constant 73 : index
      %283 = memref.load %arg4[%c73] : memref<98xf32, #tpu.memory_space<smem>>
      %284 = vector.broadcast %283 : f32 to vector<1x256xf32>
      %285 = arith.mulf %284, %21 : vector<1x256xf32>
      %286 = arith.addf %282, %285 : vector<1x256xf32>
      %c80 = arith.constant 80 : index
      %287 = memref.load %arg4[%c80] : memref<98xf32, #tpu.memory_space<smem>>
      %288 = vector.broadcast %287 : f32 to vector<1x256xf32>
      %289 = arith.mulf %288, %51 : vector<1x256xf32>
      %290 = arith.addf %286, %289 : vector<1x256xf32>
      %c87 = arith.constant 87 : index
      %291 = memref.load %arg4[%c87] : memref<98xf32, #tpu.memory_space<smem>>
      %292 = vector.broadcast %291 : f32 to vector<1x256xf32>
      %293 = arith.mulf %292, %54 : vector<1x256xf32>
      %294 = arith.addf %290, %293 : vector<1x256xf32>
      %c94 = arith.constant 94 : index
      %295 = memref.load %arg4[%c94] : memref<98xf32, #tpu.memory_space<smem>>
      %296 = vector.broadcast %295 : f32 to vector<1x256xf32>
      %297 = arith.mulf %296, %57 : vector<1x256xf32>
      %298 = arith.addf %294, %297 : vector<1x256xf32>
      %299 = arith.addf %241, %298 : vector<1x256xf32>
      %cst_58 = arith.constant 0.000000e+00 : f32
      %300 = vector.broadcast %cst_58 : f32 to vector<1x256xf32>
      %c4_59 = arith.constant 4 : index
      %301 = memref.load %arg4[%c4_59] : memref<98xf32, #tpu.memory_space<smem>>
      %302 = vector.broadcast %301 : f32 to vector<1x256xf32>
      %303 = arith.mulf %302, %24 : vector<1x256xf32>
      %304 = arith.addf %300, %303 : vector<1x256xf32>
      %c11 = arith.constant 11 : index
      %305 = memref.load %arg4[%c11] : memref<98xf32, #tpu.memory_space<smem>>
      %306 = vector.broadcast %305 : f32 to vector<1x256xf32>
      %307 = arith.mulf %306, %27 : vector<1x256xf32>
      %308 = arith.addf %304, %307 : vector<1x256xf32>
      %c18 = arith.constant 18 : index
      %309 = memref.load %arg4[%c18] : memref<98xf32, #tpu.memory_space<smem>>
      %310 = vector.broadcast %309 : f32 to vector<1x256xf32>
      %311 = arith.mulf %310, %30 : vector<1x256xf32>
      %312 = arith.addf %308, %311 : vector<1x256xf32>
      %c25 = arith.constant 25 : index
      %313 = memref.load %arg4[%c25] : memref<98xf32, #tpu.memory_space<smem>>
      %314 = vector.broadcast %313 : f32 to vector<1x256xf32>
      %315 = arith.mulf %314, %20 : vector<1x256xf32>
      %316 = arith.addf %312, %315 : vector<1x256xf32>
      %c32 = arith.constant 32 : index
      %317 = memref.load %arg4[%c32] : memref<98xf32, #tpu.memory_space<smem>>
      %318 = vector.broadcast %317 : f32 to vector<1x256xf32>
      %319 = arith.mulf %318, %33 : vector<1x256xf32>
      %320 = arith.addf %316, %319 : vector<1x256xf32>
      %c39 = arith.constant 39 : index
      %321 = memref.load %arg4[%c39] : memref<98xf32, #tpu.memory_space<smem>>
      %322 = vector.broadcast %321 : f32 to vector<1x256xf32>
      %323 = arith.mulf %322, %36 : vector<1x256xf32>
      %324 = arith.addf %320, %323 : vector<1x256xf32>
      %c46 = arith.constant 46 : index
      %325 = memref.load %arg4[%c46] : memref<98xf32, #tpu.memory_space<smem>>
      %326 = vector.broadcast %325 : f32 to vector<1x256xf32>
      %327 = arith.mulf %326, %39 : vector<1x256xf32>
      %328 = arith.addf %324, %327 : vector<1x256xf32>
      %c53 = arith.constant 53 : index
      %329 = memref.load %arg4[%c53] : memref<98xf32, #tpu.memory_space<smem>>
      %330 = vector.broadcast %329 : f32 to vector<1x256xf32>
      %331 = arith.mulf %330, %42 : vector<1x256xf32>
      %332 = arith.addf %328, %331 : vector<1x256xf32>
      %c60 = arith.constant 60 : index
      %333 = memref.load %arg4[%c60] : memref<98xf32, #tpu.memory_space<smem>>
      %334 = vector.broadcast %333 : f32 to vector<1x256xf32>
      %335 = arith.mulf %334, %45 : vector<1x256xf32>
      %336 = arith.addf %332, %335 : vector<1x256xf32>
      %c67 = arith.constant 67 : index
      %337 = memref.load %arg4[%c67] : memref<98xf32, #tpu.memory_space<smem>>
      %338 = vector.broadcast %337 : f32 to vector<1x256xf32>
      %339 = arith.mulf %338, %48 : vector<1x256xf32>
      %340 = arith.addf %336, %339 : vector<1x256xf32>
      %c74 = arith.constant 74 : index
      %341 = memref.load %arg4[%c74] : memref<98xf32, #tpu.memory_space<smem>>
      %342 = vector.broadcast %341 : f32 to vector<1x256xf32>
      %343 = arith.mulf %342, %21 : vector<1x256xf32>
      %344 = arith.addf %340, %343 : vector<1x256xf32>
      %c81 = arith.constant 81 : index
      %345 = memref.load %arg4[%c81] : memref<98xf32, #tpu.memory_space<smem>>
      %346 = vector.broadcast %345 : f32 to vector<1x256xf32>
      %347 = arith.mulf %346, %51 : vector<1x256xf32>
      %348 = arith.addf %344, %347 : vector<1x256xf32>
      %c88 = arith.constant 88 : index
      %349 = memref.load %arg4[%c88] : memref<98xf32, #tpu.memory_space<smem>>
      %350 = vector.broadcast %349 : f32 to vector<1x256xf32>
      %351 = arith.mulf %350, %54 : vector<1x256xf32>
      %352 = arith.addf %348, %351 : vector<1x256xf32>
      %c95 = arith.constant 95 : index
      %353 = memref.load %arg4[%c95] : memref<98xf32, #tpu.memory_space<smem>>
      %354 = vector.broadcast %353 : f32 to vector<1x256xf32>
      %355 = arith.mulf %354, %57 : vector<1x256xf32>
      %356 = arith.addf %352, %355 : vector<1x256xf32>
      %c255_i32 = arith.constant 255 : i32
      %357 = tpu.dynamic_rotate %356 by %c255_i32 dim 1 : vector<1x256xf32>, i32 -> vector<1x256xf32>
      %c11_60 = arith.constant 11 : index
      %c0_61 = arith.constant 0 : index
      %358 = vector.load %arg3[%c11_60, %c0_61] : memref<14x256xf32, #tpu.memory_space<vmem>>, vector<1x256xf32>
      %359 = arith.mulf %357, %358 : vector<1x256xf32>
      %360 = arith.addf %299, %359 : vector<1x256xf32>
      %cst_62 = arith.constant 0.000000e+00 : f32
      %361 = vector.broadcast %cst_62 : f32 to vector<1x256xf32>
      %c5_63 = arith.constant 5 : index
      %362 = memref.load %arg4[%c5_63] : memref<98xf32, #tpu.memory_space<smem>>
      %363 = vector.broadcast %362 : f32 to vector<1x256xf32>
      %364 = arith.mulf %363, %24 : vector<1x256xf32>
      %365 = arith.addf %361, %364 : vector<1x256xf32>
      %c12 = arith.constant 12 : index
      %366 = memref.load %arg4[%c12] : memref<98xf32, #tpu.memory_space<smem>>
      %367 = vector.broadcast %366 : f32 to vector<1x256xf32>
      %368 = arith.mulf %367, %27 : vector<1x256xf32>
      %369 = arith.addf %365, %368 : vector<1x256xf32>
      %c19 = arith.constant 19 : index
      %370 = memref.load %arg4[%c19] : memref<98xf32, #tpu.memory_space<smem>>
      %371 = vector.broadcast %370 : f32 to vector<1x256xf32>
      %372 = arith.mulf %371, %30 : vector<1x256xf32>
      %373 = arith.addf %369, %372 : vector<1x256xf32>
      %c26 = arith.constant 26 : index
      %374 = memref.load %arg4[%c26] : memref<98xf32, #tpu.memory_space<smem>>
      %375 = vector.broadcast %374 : f32 to vector<1x256xf32>
      %376 = arith.mulf %375, %20 : vector<1x256xf32>
      %377 = arith.addf %373, %376 : vector<1x256xf32>
      %c33 = arith.constant 33 : index
      %378 = memref.load %arg4[%c33] : memref<98xf32, #tpu.memory_space<smem>>
      %379 = vector.broadcast %378 : f32 to vector<1x256xf32>
      %380 = arith.mulf %379, %33 : vector<1x256xf32>
      %381 = arith.addf %377, %380 : vector<1x256xf32>
      %c40 = arith.constant 40 : index
      %382 = memref.load %arg4[%c40] : memref<98xf32, #tpu.memory_space<smem>>
      %383 = vector.broadcast %382 : f32 to vector<1x256xf32>
      %384 = arith.mulf %383, %36 : vector<1x256xf32>
      %385 = arith.addf %381, %384 : vector<1x256xf32>
      %c47 = arith.constant 47 : index
      %386 = memref.load %arg4[%c47] : memref<98xf32, #tpu.memory_space<smem>>
      %387 = vector.broadcast %386 : f32 to vector<1x256xf32>
      %388 = arith.mulf %387, %39 : vector<1x256xf32>
      %389 = arith.addf %385, %388 : vector<1x256xf32>
      %c54 = arith.constant 54 : index
      %390 = memref.load %arg4[%c54] : memref<98xf32, #tpu.memory_space<smem>>
      %391 = vector.broadcast %390 : f32 to vector<1x256xf32>
      %392 = arith.mulf %391, %42 : vector<1x256xf32>
      %393 = arith.addf %389, %392 : vector<1x256xf32>
      %c61 = arith.constant 61 : index
      %394 = memref.load %arg4[%c61] : memref<98xf32, #tpu.memory_space<smem>>
      %395 = vector.broadcast %394 : f32 to vector<1x256xf32>
      %396 = arith.mulf %395, %45 : vector<1x256xf32>
      %397 = arith.addf %393, %396 : vector<1x256xf32>
      %c68 = arith.constant 68 : index
      %398 = memref.load %arg4[%c68] : memref<98xf32, #tpu.memory_space<smem>>
      %399 = vector.broadcast %398 : f32 to vector<1x256xf32>
      %400 = arith.mulf %399, %48 : vector<1x256xf32>
      %401 = arith.addf %397, %400 : vector<1x256xf32>
      %c75 = arith.constant 75 : index
      %402 = memref.load %arg4[%c75] : memref<98xf32, #tpu.memory_space<smem>>
      %403 = vector.broadcast %402 : f32 to vector<1x256xf32>
      %404 = arith.mulf %403, %21 : vector<1x256xf32>
      %405 = arith.addf %401, %404 : vector<1x256xf32>
      %c82 = arith.constant 82 : index
      %406 = memref.load %arg4[%c82] : memref<98xf32, #tpu.memory_space<smem>>
      %407 = vector.broadcast %406 : f32 to vector<1x256xf32>
      %408 = arith.mulf %407, %51 : vector<1x256xf32>
      %409 = arith.addf %405, %408 : vector<1x256xf32>
      %c89 = arith.constant 89 : index
      %410 = memref.load %arg4[%c89] : memref<98xf32, #tpu.memory_space<smem>>
      %411 = vector.broadcast %410 : f32 to vector<1x256xf32>
      %412 = arith.mulf %411, %54 : vector<1x256xf32>
      %413 = arith.addf %409, %412 : vector<1x256xf32>
      %c96 = arith.constant 96 : index
      %414 = memref.load %arg4[%c96] : memref<98xf32, #tpu.memory_space<smem>>
      %415 = vector.broadcast %414 : f32 to vector<1x256xf32>
      %416 = arith.mulf %415, %57 : vector<1x256xf32>
      %417 = arith.addf %413, %416 : vector<1x256xf32>
      %c254_i32 = arith.constant 254 : i32
      %418 = tpu.dynamic_rotate %417 by %c254_i32 dim 1 : vector<1x256xf32>, i32 -> vector<1x256xf32>
      %c12_64 = arith.constant 12 : index
      %c0_65 = arith.constant 0 : index
      %419 = vector.load %arg3[%c12_64, %c0_65] : memref<14x256xf32, #tpu.memory_space<vmem>>, vector<1x256xf32>
      %420 = arith.mulf %418, %419 : vector<1x256xf32>
      %421 = arith.addf %360, %420 : vector<1x256xf32>
      %cst_66 = arith.constant 0.000000e+00 : f32
      %422 = vector.broadcast %cst_66 : f32 to vector<1x256xf32>
      %c6_67 = arith.constant 6 : index
      %423 = memref.load %arg4[%c6_67] : memref<98xf32, #tpu.memory_space<smem>>
      %424 = vector.broadcast %423 : f32 to vector<1x256xf32>
      %425 = arith.mulf %424, %24 : vector<1x256xf32>
      %426 = arith.addf %422, %425 : vector<1x256xf32>
      %c13 = arith.constant 13 : index
      %427 = memref.load %arg4[%c13] : memref<98xf32, #tpu.memory_space<smem>>
      %428 = vector.broadcast %427 : f32 to vector<1x256xf32>
      %429 = arith.mulf %428, %27 : vector<1x256xf32>
      %430 = arith.addf %426, %429 : vector<1x256xf32>
      %c20 = arith.constant 20 : index
      %431 = memref.load %arg4[%c20] : memref<98xf32, #tpu.memory_space<smem>>
      %432 = vector.broadcast %431 : f32 to vector<1x256xf32>
      %433 = arith.mulf %432, %30 : vector<1x256xf32>
      %434 = arith.addf %430, %433 : vector<1x256xf32>
      %c27 = arith.constant 27 : index
      %435 = memref.load %arg4[%c27] : memref<98xf32, #tpu.memory_space<smem>>
      %436 = vector.broadcast %435 : f32 to vector<1x256xf32>
      %437 = arith.mulf %436, %20 : vector<1x256xf32>
      %438 = arith.addf %434, %437 : vector<1x256xf32>
      %c34 = arith.constant 34 : index
      %439 = memref.load %arg4[%c34] : memref<98xf32, #tpu.memory_space<smem>>
      %440 = vector.broadcast %439 : f32 to vector<1x256xf32>
      %441 = arith.mulf %440, %33 : vector<1x256xf32>
      %442 = arith.addf %438, %441 : vector<1x256xf32>
      %c41 = arith.constant 41 : index
      %443 = memref.load %arg4[%c41] : memref<98xf32, #tpu.memory_space<smem>>
      %444 = vector.broadcast %443 : f32 to vector<1x256xf32>
      %445 = arith.mulf %444, %36 : vector<1x256xf32>
      %446 = arith.addf %442, %445 : vector<1x256xf32>
      %c48 = arith.constant 48 : index
      %447 = memref.load %arg4[%c48] : memref<98xf32, #tpu.memory_space<smem>>
      %448 = vector.broadcast %447 : f32 to vector<1x256xf32>
      %449 = arith.mulf %448, %39 : vector<1x256xf32>
      %450 = arith.addf %446, %449 : vector<1x256xf32>
      %c55 = arith.constant 55 : index
      %451 = memref.load %arg4[%c55] : memref<98xf32, #tpu.memory_space<smem>>
      %452 = vector.broadcast %451 : f32 to vector<1x256xf32>
      %453 = arith.mulf %452, %42 : vector<1x256xf32>
      %454 = arith.addf %450, %453 : vector<1x256xf32>
      %c62 = arith.constant 62 : index
      %455 = memref.load %arg4[%c62] : memref<98xf32, #tpu.memory_space<smem>>
      %456 = vector.broadcast %455 : f32 to vector<1x256xf32>
      %457 = arith.mulf %456, %45 : vector<1x256xf32>
      %458 = arith.addf %454, %457 : vector<1x256xf32>
      %c69 = arith.constant 69 : index
      %459 = memref.load %arg4[%c69] : memref<98xf32, #tpu.memory_space<smem>>
      %460 = vector.broadcast %459 : f32 to vector<1x256xf32>
      %461 = arith.mulf %460, %48 : vector<1x256xf32>
      %462 = arith.addf %458, %461 : vector<1x256xf32>
      %c76 = arith.constant 76 : index
      %463 = memref.load %arg4[%c76] : memref<98xf32, #tpu.memory_space<smem>>
      %464 = vector.broadcast %463 : f32 to vector<1x256xf32>
      %465 = arith.mulf %464, %21 : vector<1x256xf32>
      %466 = arith.addf %462, %465 : vector<1x256xf32>
      %c83 = arith.constant 83 : index
      %467 = memref.load %arg4[%c83] : memref<98xf32, #tpu.memory_space<smem>>
      %468 = vector.broadcast %467 : f32 to vector<1x256xf32>
      %469 = arith.mulf %468, %51 : vector<1x256xf32>
      %470 = arith.addf %466, %469 : vector<1x256xf32>
      %c90 = arith.constant 90 : index
      %471 = memref.load %arg4[%c90] : memref<98xf32, #tpu.memory_space<smem>>
      %472 = vector.broadcast %471 : f32 to vector<1x256xf32>
      %473 = arith.mulf %472, %54 : vector<1x256xf32>
      %474 = arith.addf %470, %473 : vector<1x256xf32>
      %c97 = arith.constant 97 : index
      %475 = memref.load %arg4[%c97] : memref<98xf32, #tpu.memory_space<smem>>
      %476 = vector.broadcast %475 : f32 to vector<1x256xf32>
      %477 = arith.mulf %476, %57 : vector<1x256xf32>
      %478 = arith.addf %474, %477 : vector<1x256xf32>
      %c253_i32 = arith.constant 253 : i32
      %479 = tpu.dynamic_rotate %478 by %c253_i32 dim 1 : vector<1x256xf32>, i32 -> vector<1x256xf32>
      %c13_68 = arith.constant 13 : index
      %c0_69 = arith.constant 0 : index
      %480 = vector.load %arg3[%c13_68, %c0_69] : memref<14x256xf32, #tpu.memory_space<vmem>>, vector<1x256xf32>
      %481 = arith.mulf %479, %480 : vector<1x256xf32>
      %482 = arith.addf %421, %481 : vector<1x256xf32>
      %cst_70 = arith.constant 0.000000e+00 : f32
      %483 = vector.broadcast %cst_70 : f32 to vector<1x256xf32>
      %484 = arith.subf %483, %482 : vector<1x256xf32>
      %485 = math.exp %484 : vector<1x256xf32>
      %cst_71 = arith.constant 1.000000e+00 : f32
      %486 = vector.broadcast %cst_71 : f32 to vector<1x256xf32>
      %487 = arith.addf %486, %485 : vector<1x256xf32>
      %cst_72 = arith.constant 1.000000e+00 : f32
      %488 = vector.broadcast %cst_72 : f32 to vector<1x256xf32>
      %489 = arith.divf %488, %487 : vector<1x256xf32>
      %c0_73 = arith.constant 0 : index
      %c0_74 = arith.constant 0 : index
      %c0_75 = arith.constant 0 : index
      %490 = vector.load %arg5[%c0_73, %c0_74, %c0_75] : memref<1x1x256xf32, #tpu.memory_space<vmem>>, vector<1x1x256xf32>
      %491 = vector.shape_cast %490 : vector<1x1x256xf32> to vector<1x256xf32>
      %492 = vector.shape_cast %489 : vector<1x256xf32> to vector<1x1x256xf32>
      tpu.vector_store %arg5[%c0_73, %c0_74, %c0_75], %492 {strides = array<i32>} : memref<1x1x256xf32, #tpu.memory_space<vmem>>, vector<1x1x256xf32>,
    } else {
    }
    return
  }
  func.func @transform_0(%arg0: i32, %arg1: i32) -> (i32, i32, i32) {
    %c0_i32 = arith.constant 0 : i32
    %c0_i32_0 = arith.constant 0 : i32
    return %arg0, %arg1, %c0_i32 : i32, i32, i32
  }
  func.func @transform_1(%arg0: i32, %arg1: i32) -> (i32, i32) {
    %c0_i32 = arith.constant 0 : i32
    %c0_i32_0 = arith.constant 0 : i32
    %c0_i32_1 = arith.constant 0 : i32
    return %c0_i32, %c0_i32_0 : i32, i32
  }
  func.func @transform_2(%arg0: i32, %arg1: i32) -> i32 {
    %c0_i32 = arith.constant 0 : i32
    %c0_i32_0 = arith.constant 0 : i32
    return %c0_i32 : i32
  }
  func.func @transform_3(%arg0: i32, %arg1: i32) -> (i32, i32, i32) {
    %c0_i32 = arith.constant 0 : i32
    %c0_i32_0 = arith.constant 0 : i32
    %c0_i32_1 = arith.constant 0 : i32
    return %arg0, %c0_i32, %c0_i32_0 : i32, i32, i32
  }
}

</mosaic_0001>

<llo_original>
// kernel: tpu_custom_call.1
$region0: #{tpu_custom_call.1}
  #allocation0 [shape = 'u32[]', space=smem, size = 0x4, offset = 0x4, fixed_abs, tag = 'smem constant byte address 0x4 - core index']
  #allocation1 [shape = 'u32[144,128]{1,0:T(1,128)}', space=vmem, size = 0x12000, scoped, tag = 'internal scratch']
  #allocation2 [shape = 'f32[1,256]{1,0:T(1,128)}', space=vmem, size = 0x400, scoped, tag = 'scratch operand']
  #allocation3 [shape = 'f32[1,256]{1,0:T(1,128)}', space=vmem, size = 0x400, scoped, tag = 'scratch operand']
  %s0 = inlined_call_operand.hbm [shape: f32[2,4,256], index: 0, kind: input, shape index: {}]
  %s1 = inlined_call_operand.hbm [shape: f32[14,256], index: 1, kind: input, shape index: {}]
  %s2 = inlined_call_operand.vmem [shape: f32[98], index: 2, kind: input, shape index: {}]
  %s3 = inlined_call_operand.hbm [shape: f32[2,1,256], index: 3, kind: output, shape index: {}]
  %s4 = sld [smem:[#allocation0]]
  $region65: #{tpu_custom_call.1} parent=0
    _
  %s6 = ssub.s32 1, %s4
  %s7 = scalar_select 0, %s6, %s4
  $region1: #{tpu_custom_call.1} parent=0
    #allocation4 [shape = 'u8[8192]{0}', space=vmem, size = 0x2000, scoped, tag = 'input window, operand 0']
    #allocation5 [shape = 's32[2]{0}', space=sflag, size = 0x8, scoped, tag = 'scoped memory for tpu_custom_call.1']
    #allocation6 [shape = 's32[2]{0}', space=sflag, size = 0x8, scoped, tag = 'scoped memory for tpu_custom_call.1']
    #allocation7 [shape = 's32[2]{0}', space=sflag, size = 0x8, scoped, tag = 'scoped memory for tpu_custom_call.1']
    #allocation8 [shape = 'u8[16384]{0}', space=vmem, size = 0x4000, scoped, tag = 'input window, operand 1, single buffered']
    #allocation9 [shape = 's32[1]{0}', space=sflag, size = 0x4, scoped, tag = 'scoped memory for tpu_custom_call.1']
    #allocation10 [shape = 'u8[512]{0}', space=smem, size = 0x200, scoped, tag = 'input window, operand 2, single buffered']
    #allocation11 [shape = 'u8[2048]{0}', space=vmem, size = 0x800, scoped, tag = 'output window, operand 0']
    %8 = vsyncpa [#allocation5], 0
    %s9 = scalar_lea.sflag [#allocation5], 1
    %10 = vsyncpa %s9, 0
    %11 = vsyncpa [#allocation9], 0
    %12 = vsyncpa [#allocation7], 0
    %13 = vsyncpa [#allocation6], 0
    %s14 = scalar_lea.sflag [#allocation6], 1
    %15 = vsyncpa %s14, 0
    loop: start=0, step=1, limit=4
    $region2: #{tpu_custom_call.1} parent=1 // loop_pre_header
      _
    $region3: #{tpu_custom_call.1} parent=1 // loop_header
      %s17 = sphi 0, %s21
      %p18 = scmp.ge.s32.totalorder %s17, 4
      %s24 = sphi 0, %s36
      %s25 = sphi 0, %s32
      %s26 = sphi 0, %s24
      %s27 = sphi 0, %s25
      %s28 = sphi 0, %s26
      %s29 = sphi 0, %s27
      %s41 = sphi 0, %s43
      %s44 = sphi 0, %s41
      %s45 = sphi 0, %s44
      %s61 = sphi 0, %s45
      %s65 = sphi 0, %s65
      %s67 = sphi 0, %s65
      %s68 = sphi 0, %s67
      %s82 = sphi 0, %s68
      %s86 = sphi 0, %s86
      %s88 = sphi 0, %s86
      %s89 = sphi 0, %s88
      %s103 = sphi 0, %s89
      %s109 = sphi 0, %s111
      %s112 = sphi 0, %s109
      %s113 = sphi 0, %s112
      %s129 = sphi 0, %s113
    $region4: #{tpu_custom_call.1} parent=1 // loop_header_branch
      %20 = sbr.rel (%p18) target = $region8
    $region5: #{tpu_custom_call.1} parent=1 // loop_body
      %s22 = ssub.s32 %s17, 1
      %s23 = ssub.s32 %s17, 2
      %s30 = sadd.s32 1, %s25
      %p31 = scmp.ge.s32.totalorder %s30, 1
      %s32 = scalar_select %p31, 0, %s30
      %s33 = sadd.s32 1, %s24
      %s34 = scalar_select %p31, %s33, %s24
      %p35 = scmp.ge.s32.totalorder %s34, 2
      %s36 = scalar_select %p35, 0, %s34
      %s37 = ssub.s32 %s24, %s36
      %s38 = ssub.s32 %s25, %s32
      %s39 = sor.u32 %s37, %s38
      %p40 = scmp.eq.s32.totalorder %s39, 0
      %s42 = sadd.s32 %s41, 1
      %s43 = scalar_select %p40, %s41, %s42
      %p46 = pneg %p40
      %p47 = scmp.eq.s32.totalorder %s17, 1
      %p48 = por %p46, %p47
      %p49 = scmp.ne.s32.totalorder %s41, %s44
      %p50 = scmp.eq.s32.totalorder %s17, 0
      %p51 = por %p49, %p50
      %p52 = scmp.ne.s32.totalorder %s41, %s44
      %p53 = scmp.eq.s32.totalorder %s22, 1
      %p54 = por %p52, %p53
      %p55 = scmp.ne.s32.totalorder %s44, %s45
      %p56 = scmp.eq.s32.totalorder %s22, 0
      %p57 = por %p55, %p56
      %p58 = scmp.ne.s32.totalorder %s44, %s45
      %p59 = scmp.eq.s32.totalorder %s23, 1
      %p60 = por %p58, %p59
      %p62 = scmp.ne.s32.totalorder %s45, %s61
      %p63 = scmp.eq.s32.totalorder %s23, 0
      %p64 = por %p62, %p63
      %s66 = sadd.s32 %s65, 1
      %p69 = scmp.eq.s32.totalorder %s17, 1
      %p70 = scmp.ne.s32.totalorder %s65, %s67
      %p71 = scmp.eq.s32.totalorder %s17, 0
      %p72 = por %p70, %p71
      %p73 = scmp.ne.s32.totalorder %s65, %s67
      %p74 = scmp.eq.s32.totalorder %s22, 1
      %p75 = por %p73, %p74
      %p76 = scmp.ne.s32.totalorder %s67, %s68
      %p77 = scmp.eq.s32.totalorder %s22, 0
      %p78 = por %p76, %p77
      %p79 = scmp.ne.s32.totalorder %s67, %s68
      %p80 = scmp.eq.s32.totalorder %s23, 1
      %p81 = por %p79, %p80
      %p83 = scmp.ne.s32.totalorder %s68, %s82
      %p84 = scmp.eq.s32.totalorder %s23, 0
      %p85 = por %p83, %p84
      %s87 = sadd.s32 %s86, 1
      %p90 = scmp.eq.s32.totalorder %s17, 1
      %p91 = scmp.ne.s32.totalorder %s86, %s88
      %p92 = scmp.eq.s32.totalorder %s17, 0
      %p93 = por %p91, %p92
      %p94 = scmp.ne.s32.totalorder %s86, %s88
      %p95 = scmp.eq.s32.totalorder %s22, 1
      %p96 = por %p94, %p95
      %p97 = scmp.ne.s32.totalorder %s88, %s89
      %p98 = scmp.eq.s32.totalorder %s22, 0
      %p99 = por %p97, %p98
      %p100 = scmp.ne.s32.totalorder %s88, %s89
      %p101 = scmp.eq.s32.totalorder %s23, 1
      %p102 = por %p100, %p101
      %p104 = scmp.ne.s32.totalorder %s89, %s103
      %p105 = scmp.eq.s32.totalorder %s23, 0
      %p106 = por %p104, %p105
      %s107 = ssub.s32 %s24, %s36
      %p108 = scmp.eq.s32.totalorder %s107, 0
      %s110 = sadd.s32 %s109, 1
      %s111 = scalar_select %p108, %s109, %s110
      %p114 = pneg %p108
      %p115 = scmp.eq.s32.totalorder %s17, 1
      %p116 = por %p114, %p115
      %p117 = scmp.ne.s32.totalorder %s109, %s112
      %p118 = scmp.eq.s32.totalorder %s17, 0
      %p119 = por %p117, %p118
      %p120 = scmp.ne.s32.totalorder %s109, %s112
      %p121 = scmp.eq.s32.totalorder %s22, 1
      %p122 = por %p120, %p121
      %p123 = scmp.ne.s32.totalorder %s112, %s113
      %p124 = scmp.eq.s32.totalorder %s22, 0
      %p125 = por %p123, %p124
      %p126 = scmp.ne.s32.totalorder %s112, %s113
      %p127 = scmp.eq.s32.totalorder %s23, 1
      %p128 = por %p126, %p127
      %p130 = scmp.ne.s32.totalorder %s113, %s129
      %p131 = scmp.eq.s32.totalorder %s23, 0
      %p132 = por %p130, %p131
      %p133 = scmp.le.s32.totalorder 1, %s17
      %p134 = scmp.lt.s32.totalorder %s17, 3
      %p135 = pnand %p133, %p134
      %p136 = pneg %p135
      // Predicated region
      $region9: #{tpu_custom_call.1} parent=5 // pred_check
        _
      $region10: #{tpu_custom_call.1} parent=5 // pred_check_branch
        %138 = sbr.rel (%p135) target = $region12
      $region11: #{tpu_custom_call.1} parent=5 // pred_region
        %s139 = ssub.s32 %s17, 1
        // Predicated region
        $region13: #{tpu_custom_call.1} parent=11 // pred_check
          %p140 = pneg %p78
        $region14: #{tpu_custom_call.1} parent=11 // pred_check_branch
          %142 = sbr.rel (%p140) target = $region16
        $region15: #{tpu_custom_call.1} parent=11 // pred_region
          %s144 = ssub.s32 512, 512
          %145 = vsyncadd [#allocation9], %s144
          %s146 = sshll.u32 [#allocation8], 4
          %s147 = int_to_ptr.vmem [resolvable:$true] %s146
          %152 = dma.hbm_to_vmem [thread:$0]  %s1, 512, %s147, [#allocation9], 256, 256, 16
        $region16: #{tpu_custom_call.1} parent=11 // pred_fallthru
          _
        // Predicated region
        $region17: #{tpu_custom_call.1} parent=11 // pred_check
          %p153 = pneg %p99
        $region18: #{tpu_custom_call.1} parent=11 // pred_check_branch
          %155 = sbr.rel (%p153) target = $region20
        $region19: #{tpu_custom_call.1} parent=11 // pred_region
          %s157 = ssub.s32 16, 16
          %158 = vsyncadd [#allocation7], %s157
          %s160 = sshll.u32 %s2, 4
          %s161 = int_to_ptr.vmem [resolvable:$true] %s160
          %163 = dma.vmem_to_smem %s161, 16, [#allocation10], [#allocation7]
        $region20: #{tpu_custom_call.1} parent=11 // pred_fallthru
          _
      $region12: #{tpu_custom_call.1} parent=5 // pred_fallthru
        _
      %p164 = scmp.lt.s32.totalorder %s17, 2
      // Predicated region
      $region21: #{tpu_custom_call.1} parent=5 // pred_check
        %p165 = pneg %p164
      $region22: #{tpu_custom_call.1} parent=5 // pred_check_branch
        %167 = sbr.rel (%p165) target = $region24
      $region23: #{tpu_custom_call.1} parent=5 // pred_region
        // Predicated region
        $region25: #{tpu_custom_call.1} parent=23 // pred_check
          %p168 = pneg %p51
        $region26: #{tpu_custom_call.1} parent=23 // pred_check_branch
          %170 = sbr.rel (%p168) target = $region28
        $region27: #{tpu_custom_call.1} parent=23 // pred_region
          %s171 = sand.u32 %s41, 1
          %s172 = scalar_lea.sflag [#allocation5], %s171
          %s173 = sand.u32 %s41, 1
          %s174 = smul.addr %s173, 8
          %s175 = scalar_lea.vmem [#allocation4], %s174
          %s177 = ssub.s32 128, 128
          %178 = vsyncadd %s172, %s177
          %s179 = smul.addr %s25, 2
          %s180 = smul.addr %s24, 2
          %s181 = sadd.s32 %s179, %s180
          %s182 = smul.addr %s181, 64
          %s183 = scalar_lea.hbm %s0, %s182
          %s185 = sshll.u32 %s175, 4
          %s186 = int_to_ptr.vmem [resolvable:$true] %s185
          %188 = dma.hbm_to_vmem [thread:$0]  %s183, 128, %s186, %s172
        $region28: #{tpu_custom_call.1} parent=23 // pred_fallthru
          _
      $region24: #{tpu_custom_call.1} parent=5 // pred_fallthru
        _
      %p189 = scmp.le.s32.totalorder 1, %s17
      %p190 = scmp.lt.s32.totalorder %s17, 3
      %p191 = pnand %p189, %p190
      %p192 = pneg %p191
      // Predicated region
      $region29: #{tpu_custom_call.1} parent=5 // pred_check
        _
      $region30: #{tpu_custom_call.1} parent=5 // pred_check_branch
        %194 = sbr.rel (%p191) target = $region32
      $region31: #{tpu_custom_call.1} parent=5 // pred_region
        %s195 = ssub.s32 %s17, 1
        %s196 = sand.u32 %s44, 1
        %s197 = scalar_lea.sflag [#allocation5], %s196
        %s198 = sand.u32 %s44, 1
        %s199 = smul.addr %s198, 8
        %s200 = scalar_lea.vmem [#allocation4], %s199
        // Predicated region
        $region33: #{tpu_custom_call.1} parent=31 // pred_check
          %p201 = pneg %p57
        $region34: #{tpu_custom_call.1} parent=31 // pred_check_branch
          %203 = sbr.rel (%p201) target = $region36
        $region35: #{tpu_custom_call.1} parent=31 // pred_region
          %204 = dma.done %s197, 128
        $region36: #{tpu_custom_call.1} parent=31 // pred_fallthru
          _
        // Predicated region
        $region37: #{tpu_custom_call.1} parent=31 // pred_check
          %p205 = pneg %p78
        $region38: #{tpu_custom_call.1} parent=31 // pred_check_branch
          %207 = sbr.rel (%p205) target = $region40
        $region39: #{tpu_custom_call.1} parent=31 // pred_region
          %208 = dma.done [#allocation9], 512
        $region40: #{tpu_custom_call.1} parent=31 // pred_fallthru
          _
        // Predicated region
        $region41: #{tpu_custom_call.1} parent=31 // pred_check
          %p209 = pneg %p99
        $region42: #{tpu_custom_call.1} parent=31 // pred_check_branch
          %211 = sbr.rel (%p209) target = $region44
        $region43: #{tpu_custom_call.1} parent=31 // pred_region
          %212 = dma.done [#allocation7], 16
        $region44: #{tpu_custom_call.1} parent=31 // pred_fallthru
          _
        %213 = sfence
        %s214 = sand.u32 %s44, 1
        %s215 = scalar_lea.sflag [#allocation5], %s214
        %s216 = sand.u32 %s44, 1
        %s217 = smul.addr %s216, 8
        %s218 = scalar_lea.vmem [#allocation4], %s217
        %p219 = pneg %p57
        %p220 = pneg %p54
        %p221 = pneg %p78
        %p222 = pneg %p75
        %p223 = pneg %p99
        %p224 = pneg %p96
        %p225 = pneg %p125
        %p226 = pneg %p122
        %s227 = sand.u32 %s112, 1
        %s228 = scalar_lea.sflag [#allocation6], %s227
        %s229 = sand.u32 %s112, 1
        %s230 = smul.addr %s229, 2
        %s231 = scalar_lea.vmem [#allocation11], %s230
        %p232 = scmp.eq.s32.totalorder %s27, 0
        // Predicated region
        $region45: #{tpu_custom_call.1} parent=31 // pred_check
          %p233 = pneg %p232
        $region46: #{tpu_custom_call.1} parent=31 // pred_check_branch
          %235 = sbr.rel (%p233) target = $region48
        $region47: #{tpu_custom_call.1} parent=31 // pred_region
          %v236 = vlaneseq
          %vm237 = vcmp.ge.s32.totalorder %v236, 0
          %vm238 = vcmp.lt.s32.totalorder %v236, 256
          %vm239 = vmand %vm237, %vm238
          %240 = vst.msk [vmem:[#allocation2] sm:$0x3] %vm239, 0.0
          %241 = vst.msk [vmem:[#allocation3] sm:$0x3] %vm239, -inf
        $region48: #{tpu_custom_call.1} parent=31 // pred_fallthru
          _
        %v242 = vld [vmem:[%s200] sm:$0xff]
        %v243 = vld [vmem:[#allocation2] sm:$0x3]
        %v245 = vcombine.high %v242, %v242
        %vm247 = vcmask 1043456
        %v248 = vsel %vm247, %v242, 0.0
        %v249 = vrot.slane %v248, 4
        %v250 = vadd.f32 %v248, %v249
        %v251 = vrot.slane %v250, 2
        %v252 = vadd.f32 %v250, %v251
        %v253 = vrot.slane %v252, 1
        %v254 = vadd.f32 %v252, %v253
        %v255 = vsel %vm247, %v245, 0.0
        %v256 = vrot.slane %v255, 4
        %v257 = vadd.f32 %v255, %v256
        %v258 = vrot.slane %v257, 2
        %v259 = vadd.f32 %v257, %v258
        %v260 = vrot.slane %v259, 1
        %v261 = vadd.f32 %v259, %v260
        %v264 = vcombine.low %v254, %v261
        %v266 = vunpack.c.l.s4 1966171168
        %v267 = vunpack.c.0.s8 %v266
        %v268 = vlaneseq
        %v269 = vshrl.u32 %v268, 7
        %v270 = vsub.s32 %v267, %v269
        %v271 = vrot.slane %v264, %v270
        %v273 = vunpack.c.l.s4 1966171168
        %v274 = vunpack.c.0.s8 %v273
        %v275 = vlaneseq
        %v276 = vshrl.u32 %v275, 7
        %v277 = vsub.s32 %v274, %v276
        %v278 = vrot.slane %v271, %v277
        %v280 = vadd.f32 %v243, %v278
        %v281 = vlaneseq
        %vm282 = vcmp.ge.s32.totalorder %v281, 0
        %vm283 = vcmp.lt.s32.totalorder %v281, 256
        %vm284 = vmand %vm282, %vm283
        %285 = vst.msk [vmem:[#allocation2] sm:$0x3] %vm284, %v280
        %v286 = vld [vmem:[#allocation3] sm:$0x3]
        %v287 = vsel %vm247, %v242, -inf
        %v288 = vrot.slane %v287, 4
        %v289 = vmax.f32 %v287, %v288
        %v290 = vrot.slane %v289, 2
        %v291 = vmax.f32 %v289, %v290
        %v292 = vrot.slane %v291, 1
        %v293 = vmax.f32 %v291, %v292
        %v294 = vsel %vm247, %v245, -inf
        %v295 = vrot.slane %v294, 4
        %v296 = vmax.f32 %v294, %v295
        %v297 = vrot.slane %v296, 2
        %v298 = vmax.f32 %v296, %v297
        %v299 = vrot.slane %v298, 1
        %v300 = vmax.f32 %v298, %v299
        %v303 = vcombine.low %v293, %v300
        %v305 = vunpack.c.l.s4 1966171168
        %v306 = vunpack.c.0.s8 %v305
        %v307 = vlaneseq
        %v308 = vshrl.u32 %v307, 7
        %v309 = vsub.s32 %v306, %v308
        %v310 = vrot.slane %v303, %v309
        %v312 = vunpack.c.l.s4 1966171168
        %v313 = vunpack.c.0.s8 %v312
        %v314 = vlaneseq
        %v315 = vshrl.u32 %v314, 7
        %v316 = vsub.s32 %v313, %v315
        %v317 = vrot.slane %v310, %v316
        %v319 = vmax.f32 %v286, %v317
        %320 = vst.msk [vmem:[#allocation3] sm:$0x3] %vm284, %v319
        // Predicated region
        $region49: #{tpu_custom_call.1} parent=31 // pred_check
          %p321 = pneg %p232
        $region50: #{tpu_custom_call.1} parent=31 // pred_check_branch
          %323 = sbr.rel (%p321) target = $region52
        $region51: #{tpu_custom_call.1} parent=31 // pred_region
          %v324 = vld [vmem:[#allocation2] sm:$0x3]
          %v325 = vmul.f32 %v324, 0.25
          %v326 = vld [vmem:[#allocation3] sm:$0x3]
          %v328 = vlaneseq
          %v329 = vshrl.u32 %v328, 7
          %v330 = vsub.s32 0, %v329
          %v331 = vrot.slane %v325, %v330
          %v332 = vlaneseq
          %v333 = vshrl.u32 %v332, 7
          %v334 = vsub.s32 1, %v333
          %v335 = vrot.slane %v325, %v334
          %338 = vrot.lane.b32.xlu0 %v331, 48
          %v339 = vpop.permute.xlu0 %338
          %340 = vrot.lane.b32.xlu0 %v335, 48
          %v341 = vpop.permute.xlu0 %340
          %v342 = vlaneseq
          %v343 = vand.u32 %v342, 127
          %vm344 = vcmp.lt.s32.totalorder %v343, 48
          %v345 = vsel %vm344, %v339, %v341
          %v346 = vsel %vm344, %v341, %v339
          %v347 = vld [vmem:[#allocation8] ss:$8 sm:$0x3]
          %v349 = vlaneseq
          %v350 = vshrl.u32 %v349, 7
          %v351 = vsub.s32 0, %v350
          %v352 = vrot.slane %v347, %v351
          %v353 = vlaneseq
          %v354 = vshrl.u32 %v353, 7
          %v355 = vsub.s32 1, %v354
          %v356 = vrot.slane %v347, %v355
          %v359 = vmul.f32 %v346, %v352
          %v360 = vmul.f32 %v345, %v356
          %361 = vrot.lane.b32.xlu0 %v331, 32
          %v362 = vpop.permute.xlu0 %361
          %363 = vrot.lane.b32.xlu0 %v335, 32
          %v364 = vpop.permute.xlu0 %363
          %vm365 = vcmp.lt.s32.totalorder %v343, 32
          %v366 = vsel %vm365, %v362, %v364
          %v367 = vsel %vm365, %v364, %v362
          %s368 = scalar_lea.vmem [#allocation8], 1
          %v369 = vld [vmem:[%s368] ss:$8 sm:$0x3]
          %v371 = vlaneseq
          %v372 = vshrl.u32 %v371, 7
          %v373 = vsub.s32 0, %v372
          %v374 = vrot.slane %v369, %v373
          %v375 = vlaneseq
          %v376 = vshrl.u32 %v375, 7
          %v377 = vsub.s32 1, %v376
          %v378 = vrot.slane %v369, %v377
          %v381 = vmul.f32 %v367, %v374
          %v382 = vmul.f32 %v366, %v378
          %383 = vrot.lane.b32.xlu0 %v331, 16
          %v384 = vpop.permute.xlu0 %383
          %385 = vrot.lane.b32.xlu0 %v335, 16
          %v386 = vpop.permute.xlu0 %385
          %vm387 = vcmp.lt.s32.totalorder %v343, 16
          %v388 = vsel %vm387, %v384, %v386
          %v389 = vsel %vm387, %v386, %v384
          %s390 = scalar_lea.vmem [#allocation8], 2
          %v391 = vld [vmem:[%s390] ss:$8 sm:$0x3]
          %v393 = vlaneseq
          %v394 = vshrl.u32 %v393, 7
          %v395 = vsub.s32 0, %v394
          %v396 = vrot.slane %v391, %v395
          %v397 = vlaneseq
          %v398 = vshrl.u32 %v397, 7
          %v399 = vsub.s32 1, %v398
          %v400 = vrot.slane %v391, %v399
          %v403 = vmul.f32 %v389, %v396
          %v404 = vmul.f32 %v388, %v400
          %405 = vrot.lane.b32.xlu0 %v331, 112
          %v406 = vpop.permute.xlu0 %405
          %407 = vrot.lane.b32.xlu0 %v335, 112
          %v408 = vpop.permute.xlu0 %407
          %vm409 = vcmp.lt.s32.totalorder %v343, 112
          %v410 = vsel %vm409, %v406, %v408
          %v411 = vsel %vm409, %v408, %v406
          %s412 = scalar_lea.vmem [#allocation8], 4
          %v413 = vld [vmem:[%s412] ss:$8 sm:$0x3]
          %v415 = vlaneseq
          %v416 = vshrl.u32 %v415, 7
          %v417 = vsub.s32 0, %v416
          %v418 = vrot.slane %v413, %v417
          %v419 = vlaneseq
          %v420 = vshrl.u32 %v419, 7
          %v421 = vsub.s32 1, %v420
          %v422 = vrot.slane %v413, %v421
          %v425 = vmul.f32 %v410, %v418
          %v426 = vmul.f32 %v411, %v422
          %427 = vrot.lane.b32.xlu0 %v331, 96
          %v428 = vpop.permute.xlu0 %427
          %429 = vrot.lane.b32.xlu0 %v335, 96
          %v430 = vpop.permute.xlu0 %429
          %vm431 = vcmp.lt.s32.totalorder %v343, 96
          %v432 = vsel %vm431, %v428, %v430
          %v433 = vsel %vm431, %v430, %v428
          %s434 = scalar_lea.vmem [#allocation8], 5
          %v435 = vld [vmem:[%s434] ss:$8 sm:$0x3]
          %v437 = vlaneseq
          %v438 = vshrl.u32 %v437, 7
          %v439 = vsub.s32 0, %v438
          %v440 = vrot.slane %v435, %v439
          %v441 = vlaneseq
          %v442 = vshrl.u32 %v441, 7
          %v443 = vsub.s32 1, %v442
          %v444 = vrot.slane %v435, %v443
          %v447 = vmul.f32 %v432, %v440
          %v448 = vmul.f32 %v433, %v444
          %449 = vrot.lane.b32.xlu0 %v331, 80
          %v450 = vpop.permute.xlu0 %449
          %451 = vrot.lane.b32.xlu0 %v335, 80
          %v452 = vpop.permute.xlu0 %451
          %vm453 = vcmp.lt.s32.totalorder %v343, 80
          %v454 = vsel %vm453, %v450, %v452
          %v455 = vsel %vm453, %v452, %v450
          %s456 = scalar_lea.vmem [#allocation8], 6
          %v457 = vld [vmem:[%s456] ss:$8 sm:$0x3]
          %v459 = vlaneseq
          %v460 = vshrl.u32 %v459, 7
          %v461 = vsub.s32 0, %v460
          %v462 = vrot.slane %v457, %v461
          %v463 = vlaneseq
          %v464 = vshrl.u32 %v463, 7
          %v465 = vsub.s32 1, %v464
          %v466 = vrot.slane %v457, %v465
          %v469 = vmul.f32 %v454, %v462
          %v470 = vmul.f32 %v455, %v466
          %v472 = vlaneseq
          %v473 = vshrl.u32 %v472, 7
          %v474 = vsub.s32 0, %v473
          %v475 = vrot.slane %v326, %v474
          %v476 = vlaneseq
          %v477 = vshrl.u32 %v476, 7
          %v478 = vsub.s32 1, %v477
          %v479 = vrot.slane %v326, %v478
          %482 = vrot.lane.b32.xlu0 %v475, 48
          %v483 = vpop.permute.xlu0 %482
          %484 = vrot.lane.b32.xlu0 %v479, 48
          %v485 = vpop.permute.xlu0 %484
          %v486 = vsel %vm344, %v483, %v485
          %v487 = vsel %vm344, %v485, %v483
          %v488 = vmul.f32 %v487, %v352
          %v489 = vmul.f32 %v486, %v356
          %490 = vrot.lane.b32.xlu0 %v475, 32
          %v491 = vpop.permute.xlu0 %490
          %492 = vrot.lane.b32.xlu0 %v479, 32
          %v493 = vpop.permute.xlu0 %492
          %v494 = vsel %vm365, %v491, %v493
          %v495 = vsel %vm365, %v493, %v491
          %v496 = vmul.f32 %v495, %v374
          %v497 = vmul.f32 %v494, %v378
          %498 = vrot.lane.b32.xlu0 %v475, 16
          %v499 = vpop.permute.xlu0 %498
          %500 = vrot.lane.b32.xlu0 %v479, 16
          %v501 = vpop.permute.xlu0 %500
          %v502 = vsel %vm387, %v499, %v501
          %v503 = vsel %vm387, %v501, %v499
          %v504 = vmul.f32 %v503, %v396
          %v505 = vmul.f32 %v502, %v400
          %506 = vrot.lane.b32.xlu0 %v475, 112
          %v507 = vpop.permute.xlu0 %506
          %508 = vrot.lane.b32.xlu0 %v479, 112
          %v509 = vpop.permute.xlu0 %508
          %v510 = vsel %vm409, %v507, %v509
          %v511 = vsel %vm409, %v509, %v507
          %v512 = vmul.f32 %v510, %v418
          %v513 = vmul.f32 %v511, %v422
          %514 = vrot.lane.b32.xlu0 %v475, 96
          %v515 = vpop.permute.xlu0 %514
          %516 = vrot.lane.b32.xlu0 %v479, 96
          %v517 = vpop.permute.xlu0 %516
          %v518 = vsel %vm431, %v515, %v517
          %v519 = vsel %vm431, %v517, %v515
          %v520 = vmul.f32 %v518, %v440
          %v521 = vmul.f32 %v519, %v444
          %522 = vrot.lane.b32.xlu0 %v475, 80
          %v523 = vpop.permute.xlu0 %522
          %524 = vrot.lane.b32.xlu0 %v479, 80
          %v525 = vpop.permute.xlu0 %524
          %v526 = vsel %vm453, %v523, %v525
          %v527 = vsel %vm453, %v525, %v523
          %v528 = vmul.f32 %v526, %v462
          %v529 = vmul.f32 %v527, %v466
          %s530 = sld [smem:[#allocation10]]
          %v531 = vstv %s530
          %v532 = vmul.f32 %v531, %v359
          %v533 = vmul.f32 %v531, %v360
          %v534 = vadd.f32 %v532, 0.0
          %v535 = vadd.f32 %v533, 0.0
          %s536 = sld [smem:[#allocation10 + $0x7]]
          %v537 = vstv %s536
          %v538 = vmul.f32 %v537, %v381
          %v539 = vmul.f32 %v537, %v382
          %v540 = vadd.f32 %v534, %v538
          %v541 = vadd.f32 %v535, %v539
          %s542 = sld [smem:[#allocation10 + $0xe]]
          %v543 = vstv %s542
          %v544 = vmul.f32 %v543, %v403
          %v545 = vmul.f32 %v543, %v404
          %v546 = vadd.f32 %v540, %v544
          %v547 = vadd.f32 %v541, %v545
          %s548 = sld [smem:[#allocation10 + $0x15]]
          %v549 = vstv %s548
          %v550 = vmul.f32 %v549, %v325
          %v552 = vlaneseq
          %v553 = vshrl.u32 %v552, 7
          %v554 = vsub.s32 0, %v553
          %v555 = vrot.slane %v550, %v554
          %v556 = vlaneseq
          %v557 = vshrl.u32 %v556, 7
          %v558 = vsub.s32 1, %v557
          %v559 = vrot.slane %v550, %v558
          %v562 = vadd.f32 %v546, %v555
          %v563 = vadd.f32 %v547, %v559
          %s564 = sld [smem:[#allocation10 + $0x1c]]
          %v565 = vstv %s564
          %v566 = vmul.f32 %v565, %v425
          %v567 = vmul.f32 %v565, %v426
          %v568 = vadd.f32 %v562, %v566
          %v569 = vadd.f32 %v563, %v567
          %s570 = sld [smem:[#allocation10 + $0x23]]
          %v571 = vstv %s570
          %v572 = vmul.f32 %v571, %v447
          %v573 = vmul.f32 %v571, %v448
          %v574 = vadd.f32 %v568, %v572
          %v575 = vadd.f32 %v569, %v573
          %s576 = sld [smem:[#allocation10 + $0x2a]]
          %v577 = vstv %s576
          %v578 = vmul.f32 %v577, %v469
          %v579 = vmul.f32 %v577, %v470
          %v580 = vadd.f32 %v574, %v578
          %v581 = vadd.f32 %v575, %v579
          %s582 = sld [smem:[#allocation10 + $0x31]]
          %v583 = vstv %s582
          %v584 = vmul.f32 %v583, %v488
          %v585 = vmul.f32 %v583, %v489
          %v586 = vadd.f32 %v580, %v584
          %v587 = vadd.f32 %v581, %v585
          %s588 = sld [smem:[#allocation10 + $0x38]]
          %v589 = vstv %s588
          %v590 = vmul.f32 %v589, %v496
          %v591 = vmul.f32 %v589, %v497
          %v592 = vadd.f32 %v586, %v590
          %v593 = vadd.f32 %v587, %v591
          %s594 = sld [smem:[#allocation10 + $0x3f]]
          %v595 = vstv %s594
          %v596 = vmul.f32 %v595, %v504
          %v597 = vmul.f32 %v595, %v505
          %v598 = vadd.f32 %v592, %v596
          %v599 = vadd.f32 %v593, %v597
          %s600 = sld [smem:[#allocation10 + $0x46]]
          %v601 = vstv %s600
          %v602 = vmul.f32 %v601, %v326
          %v604 = vlaneseq
          %v605 = vshrl.u32 %v604, 7
          %v606 = vsub.s32 0, %v605
          %v607 = vrot.slane %v602, %v606
          %v608 = vlaneseq
          %v609 = vshrl.u32 %v608, 7
          %v610 = vsub.s32 1, %v609
          %v611 = vrot.slane %v602, %v610
          %v614 = vadd.f32 %v598, %v607
          %v615 = vadd.f32 %v599, %v611
          %s616 = sld [smem:[#allocation10 + $0x4d]]
          %v617 = vstv %s616
          %v618 = vmul.f32 %v617, %v512
          %v619 = vmul.f32 %v617, %v513
          %v620 = vadd.f32 %v614, %v618
          %v621 = vadd.f32 %v615, %v619
          %s622 = sld [smem:[#allocation10 + $0x54]]
          %v623 = vstv %s622
          %v624 = vmul.f32 %v623, %v520
          %v625 = vmul.f32 %v623, %v521
          %v626 = vadd.f32 %v620, %v624
          %v627 = vadd.f32 %v621, %v625
          %s628 = sld [smem:[#allocation10 + $0x5b]]
          %v629 = vstv %s628
          %v630 = vmul.f32 %v629, %v528
          %v631 = vmul.f32 %v629, %v529
          %v632 = vadd.f32 %v626, %v630
          %v633 = vadd.f32 %v627, %v631
          %634 = vrot.lane.b32.xlu0 %v632, 3
          %v635 = vpop.permute.xlu0 %634
          %636 = vrot.lane.b32.xlu0 %v633, 3
          %v637 = vpop.permute.xlu0 %636
          %vm638 = vcmp.lt.s32.totalorder %v343, 3
          %v639 = vsel %vm638, %v635, %v637
          %v640 = vsel %vm638, %v637, %v635
          %s641 = scalar_lea.vmem [#allocation8], 7
          %v642 = vld [vmem:[%s641] ss:$8 sm:$0x3]
          %v644 = vlaneseq
          %v645 = vshrl.u32 %v644, 7
          %v646 = vsub.s32 0, %v645
          %v647 = vrot.slane %v642, %v646
          %v648 = vlaneseq
          %v649 = vshrl.u32 %v648, 7
          %v650 = vsub.s32 1, %v649
          %v651 = vrot.slane %v642, %v650
          %v654 = vmul.f32 %v640, %v647
          %v655 = vmul.f32 %v639, %v651
          %v656 = vadd.f32 %v654, 0.0
          %v657 = vadd.f32 %v655, 0.0
          %s658 = sld [smem:[#allocation10 + $0x1]]
          %v659 = vstv %s658
          %v660 = vmul.f32 %v659, %v359
          %v661 = vmul.f32 %v659, %v360
          %v662 = vadd.f32 %v660, 0.0
          %v663 = vadd.f32 %v661, 0.0
          %s664 = sld [smem:[#allocation10 + $0x8]]
          %v665 = vstv %s664
          %v666 = vmul.f32 %v665, %v381
          %v667 = vmul.f32 %v665, %v382
          %v668 = vadd.f32 %v662, %v666
          %v669 = vadd.f32 %v663, %v667
          %s670 = sld [smem:[#allocation10 + $0xf]]
          %v671 = vstv %s670
          %v672 = vmul.f32 %v671, %v403
          %v673 = vmul.f32 %v671, %v404
          %v674 = vadd.f32 %v668, %v672
          %v675 = vadd.f32 %v669, %v673
          %s676 = sld [smem:[#allocation10 + $0x16]]
          %v677 = vstv %s676
          %v678 = vmul.f32 %v677, %v325
          %v680 = vlaneseq
          %v681 = vshrl.u32 %v680, 7
          %v682 = vsub.s32 0, %v681
          %v683 = vrot.slane %v678, %v682
          %v684 = vlaneseq
          %v685 = vshrl.u32 %v684, 7
          %v686 = vsub.s32 1, %v685
          %v687 = vrot.slane %v678, %v686
          %v690 = vadd.f32 %v674, %v683
          %v691 = vadd.f32 %v675, %v687
          %s692 = sld [smem:[#allocation10 + $0x1d]]
          %v693 = vstv %s692
          %v694 = vmul.f32 %v693, %v425
          %v695 = vmul.f32 %v693, %v426
          %v696 = vadd.f32 %v690, %v694
          %v697 = vadd.f32 %v691, %v695
          %s698 = sld [smem:[#allocation10 + $0x24]]
          %v699 = vstv %s698
          %v700 = vmul.f32 %v699, %v447
          %v701 = vmul.f32 %v699, %v448
          %v702 = vadd.f32 %v696, %v700
          %v703 = vadd.f32 %v697, %v701
          %s704 = sld [smem:[#allocation10 + $0x2b]]
          %v705 = vstv %s704
          %v706 = vmul.f32 %v705, %v469
          %v707 = vmul.f32 %v705, %v470
          %v708 = vadd.f32 %v702, %v706
          %v709 = vadd.f32 %v703, %v707
          %s710 = sld [smem:[#allocation10 + $0x32]]
          %v711 = vstv %s710
          %v712 = vmul.f32 %v711, %v488
          %v713 = vmul.f32 %v711, %v489
          %v714 = vadd.f32 %v708, %v712
          %v715 = vadd.f32 %v709, %v713
          %s716 = sld [smem:[#allocation10 + $0x39]]
          %v717 = vstv %s716
          %v718 = vmul.f32 %v717, %v496
          %v719 = vmul.f32 %v717, %v497
          %v720 = vadd.f32 %v714, %v718
          %v721 = vadd.f32 %v715, %v719
          %s722 = sld [smem:[#allocation10 + $0x40]]
          %v723 = vstv %s722
          %v724 = vmul.f32 %v723, %v504
          %v725 = vmul.f32 %v723, %v505
          %v726 = vadd.f32 %v720, %v724
          %v727 = vadd.f32 %v721, %v725
          %s728 = sld [smem:[#allocation10 + $0x47]]
          %v729 = vstv %s728
          %v730 = vmul.f32 %v729, %v326
          %v732 = vlaneseq
          %v733 = vshrl.u32 %v732, 7
          %v734 = vsub.s32 0, %v733
          %v735 = vrot.slane %v730, %v734
          %v736 = vlaneseq
          %v737 = vshrl.u32 %v736, 7
          %v738 = vsub.s32 1, %v737
          %v739 = vrot.slane %v730, %v738
          %v742 = vadd.f32 %v726, %v735
          %v743 = vadd.f32 %v727, %v739
          %s744 = sld [smem:[#allocation10 + $0x4e]]
          %v745 = vstv %s744
          %v746 = vmul.f32 %v745, %v512
          %v747 = vmul.f32 %v745, %v513
          %v748 = vadd.f32 %v742, %v746
          %v749 = vadd.f32 %v743, %v747
          %s750 = sld [smem:[#allocation10 + $0x55]]
          %v751 = vstv %s750
          %v752 = vmul.f32 %v751, %v520
          %v753 = vmul.f32 %v751, %v521
          %v754 = vadd.f32 %v748, %v752
          %v755 = vadd.f32 %v749, %v753
          %s756 = sld [smem:[#allocation10 + $0x5c]]
          %v757 = vstv %s756
          %v758 = vmul.f32 %v757, %v528
          %v759 = vmul.f32 %v757, %v529
          %v760 = vadd.f32 %v754, %v758
          %v761 = vadd.f32 %v755, %v759
          %762 = vrot.lane.b32.xlu0 %v760, 2
          %v763 = vpop.permute.xlu0 %762
          %764 = vrot.lane.b32.xlu0 %v761, 2
          %v765 = vpop.permute.xlu0 %764
          %vm766 = vcmp.lt.s32.totalorder %v343, 2
          %v767 = vsel %vm766, %v763, %v765
          %v768 = vsel %vm766, %v765, %v763
          %s769 = scalar_lea.vmem [#allocation8], 16
          %v770 = vld [vmem:[%s769] ss:$8 sm:$0x3]
          %v772 = vlaneseq
          %v773 = vshrl.u32 %v772, 7
          %v774 = vsub.s32 0, %v773
          %v775 = vrot.slane %v770, %v774
          %v776 = vlaneseq
          %v777 = vshrl.u32 %v776, 7
          %v778 = vsub.s32 1, %v777
          %v779 = vrot.slane %v770, %v778
          %v782 = vmul.f32 %v768, %v775
          %v783 = vmul.f32 %v767, %v779
          %v784 = vadd.f32 %v656, %v782
          %v785 = vadd.f32 %v657, %v783
          %s786 = sld [smem:[#allocation10 + $0x2]]
          %v787 = vstv %s786
          %v788 = vmul.f32 %v787, %v359
          %v789 = vmul.f32 %v787, %v360
          %v790 = vadd.f32 %v788, 0.0
          %v791 = vadd.f32 %v789, 0.0
          %s792 = sld [smem:[#allocation10 + $0x9]]
          %v793 = vstv %s792
          %v794 = vmul.f32 %v793, %v381
          %v795 = vmul.f32 %v793, %v382
          %v796 = vadd.f32 %v790, %v794
          %v797 = vadd.f32 %v791, %v795
          %s798 = sld [smem:[#allocation10 + $0x10]]
          %v799 = vstv %s798
          %v800 = vmul.f32 %v799, %v403
          %v801 = vmul.f32 %v799, %v404
          %v802 = vadd.f32 %v796, %v800
          %v803 = vadd.f32 %v797, %v801
          %s804 = sld [smem:[#allocation10 + $0x17]]
          %v805 = vstv %s804
          %v806 = vmul.f32 %v805, %v325
          %v808 = vlaneseq
          %v809 = vshrl.u32 %v808, 7
          %v810 = vsub.s32 0, %v809
          %v811 = vrot.slane %v806, %v810
          %v812 = vlaneseq
          %v813 = vshrl.u32 %v812, 7
          %v814 = vsub.s32 1, %v813
          %v815 = vrot.slane %v806, %v814
          %v818 = vadd.f32 %v802, %v811
          %v819 = vadd.f32 %v803, %v815
          %s820 = sld [smem:[#allocation10 + $0x1e]]
          %v821 = vstv %s820
          %v822 = vmul.f32 %v821, %v425
          %v823 = vmul.f32 %v821, %v426
          %v824 = vadd.f32 %v818, %v822
          %v825 = vadd.f32 %v819, %v823
          %s826 = sld [smem:[#allocation10 + $0x25]]
          %v827 = vstv %s826
          %v828 = vmul.f32 %v827, %v447
          %v829 = vmul.f32 %v827, %v448
          %v830 = vadd.f32 %v824, %v828
          %v831 = vadd.f32 %v825, %v829
          %s832 = sld [smem:[#allocation10 + $0x2c]]
          %v833 = vstv %s832
          %v834 = vmul.f32 %v833, %v469
          %v835 = vmul.f32 %v833, %v470
          %v836 = vadd.f32 %v830, %v834
          %v837 = vadd.f32 %v831, %v835
          %s838 = sld [smem:[#allocation10 + $0x33]]
          %v839 = vstv %s838
          %v840 = vmul.f32 %v839, %v488
          %v841 = vmul.f32 %v839, %v489
          %v842 = vadd.f32 %v836, %v840
          %v843 = vadd.f32 %v837, %v841
          %s844 = sld [smem:[#allocation10 + $0x3a]]
          %v845 = vstv %s844
          %v846 = vmul.f32 %v845, %v496
          %v847 = vmul.f32 %v845, %v497
          %v848 = vadd.f32 %v842, %v846
          %v849 = vadd.f32 %v843, %v847
          %s850 = sld [smem:[#allocation10 + $0x41]]
          %v851 = vstv %s850
          %v852 = vmul.f32 %v851, %v504
          %v853 = vmul.f32 %v851, %v505
          %v854 = vadd.f32 %v848, %v852
          %v855 = vadd.f32 %v849, %v853
          %s856 = sld [smem:[#allocation10 + $0x48]]
          %v857 = vstv %s856
          %v858 = vmul.f32 %v857, %v326
          %v860 = vlaneseq
          %v861 = vshrl.u32 %v860, 7
          %v862 = vsub.s32 0, %v861
          %v863 = vrot.slane %v858, %v862
          %v864 = vlaneseq
          %v865 = vshrl.u32 %v864, 7
          %v866 = vsub.s32 1, %v865
          %v867 = vrot.slane %v858, %v866
          %v870 = vadd.f32 %v854, %v863
          %v871 = vadd.f32 %v855, %v867
          %s872 = sld [smem:[#allocation10 + $0x4f]]
          %v873 = vstv %s872
          %v874 = vmul.f32 %v873, %v512
          %v875 = vmul.f32 %v873, %v513
          %v876 = vadd.f32 %v870, %v874
          %v877 = vadd.f32 %v871, %v875
          %s878 = sld [smem:[#allocation10 + $0x56]]
          %v879 = vstv %s878
          %v880 = vmul.f32 %v879, %v520
          %v881 = vmul.f32 %v879, %v521
          %v882 = vadd.f32 %v876, %v880
          %v883 = vadd.f32 %v877, %v881
          %s884 = sld [smem:[#allocation10 + $0x5d]]
          %v885 = vstv %s884
          %v886 = vmul.f32 %v885, %v528
          %v887 = vmul.f32 %v885, %v529
          %v888 = vadd.f32 %v882, %v886
          %v889 = vadd.f32 %v883, %v887
          %890 = vrot.lane.b32.xlu0 %v888, 1
          %v891 = vpop.permute.xlu0 %890
          %892 = vrot.lane.b32.xlu0 %v889, 1
          %v893 = vpop.permute.xlu0 %892
          %vm894 = vcmp.lt.s32.totalorder %v343, 1
          %v895 = vsel %vm894, %v891, %v893
          %v896 = vsel %vm894, %v893, %v891
          %s897 = scalar_lea.vmem [#allocation8], 17
          %v898 = vld [vmem:[%s897] ss:$8 sm:$0x3]
          %v900 = vlaneseq
          %v901 = vshrl.u32 %v900, 7
          %v902 = vsub.s32 0, %v901
          %v903 = vrot.slane %v898, %v902
          %v904 = vlaneseq
          %v905 = vshrl.u32 %v904, 7
          %v906 = vsub.s32 1, %v905
          %v907 = vrot.slane %v898, %v906
          %v910 = vmul.f32 %v896, %v903
          %v911 = vmul.f32 %v895, %v907
          %v912 = vadd.f32 %v784, %v910
          %v913 = vadd.f32 %v785, %v911
          %s914 = sld [smem:[#allocation10 + $0x3]]
          %v915 = vstv %s914
          %v916 = vmul.f32 %v915, %v359
          %v917 = vmul.f32 %v915, %v360
          %v918 = vadd.f32 %v916, 0.0
          %v919 = vadd.f32 %v917, 0.0
          %s920 = sld [smem:[#allocation10 + $0xa]]
          %v921 = vstv %s920
          %v922 = vmul.f32 %v921, %v381
          %v923 = vmul.f32 %v921, %v382
          %v924 = vadd.f32 %v918, %v922
          %v925 = vadd.f32 %v919, %v923
          %s926 = sld [smem:[#allocation10 + $0x11]]
          %v927 = vstv %s926
          %v928 = vmul.f32 %v927, %v403
          %v929 = vmul.f32 %v927, %v404
          %v930 = vadd.f32 %v924, %v928
          %v931 = vadd.f32 %v925, %v929
          %s932 = sld [smem:[#allocation10 + $0x18]]
          %v933 = vstv %s932
          %v934 = vmul.f32 %v933, %v325
          %v936 = vlaneseq
          %v937 = vshrl.u32 %v936, 7
          %v938 = vsub.s32 0, %v937
          %v939 = vrot.slane %v934, %v938
          %v940 = vlaneseq
          %v941 = vshrl.u32 %v940, 7
          %v942 = vsub.s32 1, %v941
          %v943 = vrot.slane %v934, %v942
          %v946 = vadd.f32 %v930, %v939
          %v947 = vadd.f32 %v931, %v943
          %s948 = sld [smem:[#allocation10 + $0x1f]]
          %v949 = vstv %s948
          %v950 = vmul.f32 %v949, %v425
          %v951 = vmul.f32 %v949, %v426
          %v952 = vadd.f32 %v946, %v950
          %v953 = vadd.f32 %v947, %v951
          %s954 = sld [smem:[#allocation10 + $0x26]]
          %v955 = vstv %s954
          %v956 = vmul.f32 %v955, %v447
          %v957 = vmul.f32 %v955, %v448
          %v958 = vadd.f32 %v952, %v956
          %v959 = vadd.f32 %v953, %v957
          %s960 = sld [smem:[#allocation10 + $0x2d]]
          %v961 = vstv %s960
          %v962 = vmul.f32 %v961, %v469
          %v963 = vmul.f32 %v961, %v470
          %v964 = vadd.f32 %v958, %v962
          %v965 = vadd.f32 %v959, %v963
          %s966 = sld [smem:[#allocation10 + $0x34]]
          %v967 = vstv %s966
          %v968 = vmul.f32 %v967, %v488
          %v969 = vmul.f32 %v967, %v489
          %v970 = vadd.f32 %v964, %v968
          %v971 = vadd.f32 %v965, %v969
          %s972 = sld [smem:[#allocation10 + $0x3b]]
          %v973 = vstv %s972
          %v974 = vmul.f32 %v973, %v496
          %v975 = vmul.f32 %v973, %v497
          %v976 = vadd.f32 %v970, %v974
          %v977 = vadd.f32 %v971, %v975
          %s978 = sld [smem:[#allocation10 + $0x42]]
          %v979 = vstv %s978
          %v980 = vmul.f32 %v979, %v504
          %v981 = vmul.f32 %v979, %v505
          %v982 = vadd.f32 %v976, %v980
          %v983 = vadd.f32 %v977, %v981
          %s984 = sld [smem:[#allocation10 + $0x49]]
          %v985 = vstv %s984
          %v986 = vmul.f32 %v985, %v326
          %v988 = vlaneseq
          %v989 = vshrl.u32 %v988, 7
          %v990 = vsub.s32 0, %v989
          %v991 = vrot.slane %v986, %v990
          %v992 = vlaneseq
          %v993 = vshrl.u32 %v992, 7
          %v994 = vsub.s32 1, %v993
          %v995 = vrot.slane %v986, %v994
          %v998 = vadd.f32 %v982, %v991
          %v999 = vadd.f32 %v983, %v995
          %s1000 = sld [smem:[#allocation10 + $0x50]]
          %v1001 = vstv %s1000
          %v1002 = vmul.f32 %v1001, %v512
          %v1003 = vmul.f32 %v1001, %v513
          %v1004 = vadd.f32 %v998, %v1002
          %v1005 = vadd.f32 %v999, %v1003
          %s1006 = sld [smem:[#allocation10 + $0x57]]
          %v1007 = vstv %s1006
          %v1008 = vmul.f32 %v1007, %v520
          %v1009 = vmul.f32 %v1007, %v521
          %v1010 = vadd.f32 %v1004, %v1008
          %v1011 = vadd.f32 %v1005, %v1009
          %s1012 = sld [smem:[#allocation10 + $0x5e]]
          %v1013 = vstv %s1012
          %v1014 = vmul.f32 %v1013, %v528
          %v1015 = vmul.f32 %v1013, %v529
          %v1016 = vadd.f32 %v1010, %v1014
          %v1017 = vadd.f32 %v1011, %v1015
          %v1018 = vadd.f32 %v912, %v1016
          %v1019 = vadd.f32 %v913, %v1017
          %s1020 = sld [smem:[#allocation10 + $0x4]]
          %v1021 = vstv %s1020
          %v1022 = vmul.f32 %v1021, %v359
          %v1023 = vmul.f32 %v1021, %v360
          %v1024 = vadd.f32 %v1022, 0.0
          %v1025 = vadd.f32 %v1023, 0.0
          %s1026 = sld [smem:[#allocation10 + $0xb]]
          %v1027 = vstv %s1026
          %v1028 = vmul.f32 %v1027, %v381
          %v1029 = vmul.f32 %v1027, %v382
          %v1030 = vadd.f32 %v1024, %v1028
          %v1031 = vadd.f32 %v1025, %v1029
          %s1032 = sld [smem:[#allocation10 + $0x12]]
          %v1033 = vstv %s1032
          %v1034 = vmul.f32 %v1033, %v403
          %v1035 = vmul.f32 %v1033, %v404
          %v1036 = vadd.f32 %v1030, %v1034
          %v1037 = vadd.f32 %v1031, %v1035
          %s1038 = sld [smem:[#allocation10 + $0x19]]
          %v1039 = vstv %s1038
          %v1040 = vmul.f32 %v1039, %v325
          %v1042 = vlaneseq
          %v1043 = vshrl.u32 %v1042, 7
          %v1044 = vsub.s32 0, %v1043
          %v1045 = vrot.slane %v1040, %v1044
          %v1046 = vlaneseq
          %v1047 = vshrl.u32 %v1046, 7
          %v1048 = vsub.s32 1, %v1047
          %v1049 = vrot.slane %v1040, %v1048
          %v1052 = vadd.f32 %v1036, %v1045
          %v1053 = vadd.f32 %v1037, %v1049
          %s1054 = sld [smem:[#allocation10 + $0x20]]
          %v1055 = vstv %s1054
          %v1056 = vmul.f32 %v1055, %v425
          %v1057 = vmul.f32 %v1055, %v426
          %v1058 = vadd.f32 %v1052, %v1056
          %v1059 = vadd.f32 %v1053, %v1057
          %s1060 = sld [smem:[#allocation10 + $0x27]]
          %v1061 = vstv %s1060
          %v1062 = vmul.f32 %v1061, %v447
          %v1063 = vmul.f32 %v1061, %v448
          %v1064 = vadd.f32 %v1058, %v1062
          %v1065 = vadd.f32 %v1059, %v1063
          %s1066 = sld [smem:[#allocation10 + $0x2e]]
          %v1067 = vstv %s1066
          %v1068 = vmul.f32 %v1067, %v469
          %v1069 = vmul.f32 %v1067, %v470
          %v1070 = vadd.f32 %v1064, %v1068
          %v1071 = vadd.f32 %v1065, %v1069
          %s1072 = sld [smem:[#allocation10 + $0x35]]
          %v1073 = vstv %s1072
          %v1074 = vmul.f32 %v1073, %v488
          %v1075 = vmul.f32 %v1073, %v489
          %v1076 = vadd.f32 %v1070, %v1074
          %v1077 = vadd.f32 %v1071, %v1075
          %s1078 = sld [smem:[#allocation10 + $0x3c]]
          %v1079 = vstv %s1078
          %v1080 = vmul.f32 %v1079, %v496
          %v1081 = vmul.f32 %v1079, %v497
          %v1082 = vadd.f32 %v1076, %v1080
          %v1083 = vadd.f32 %v1077, %v1081
          %s1084 = sld [smem:[#allocation10 + $0x43]]
          %v1085 = vstv %s1084
          %v1086 = vmul.f32 %v1085, %v504
          %v1087 = vmul.f32 %v1085, %v505
          %v1088 = vadd.f32 %v1082, %v1086
          %v1089 = vadd.f32 %v1083, %v1087
          %s1090 = sld [smem:[#allocation10 + $0x4a]]
          %v1091 = vstv %s1090
          %v1092 = vmul.f32 %v1091, %v326
          %v1094 = vlaneseq
          %v1095 = vshrl.u32 %v1094, 7
          %v1096 = vsub.s32 0, %v1095
          %v1097 = vrot.slane %v1092, %v1096
          %v1098 = vlaneseq
          %v1099 = vshrl.u32 %v1098, 7
          %v1100 = vsub.s32 1, %v1099
          %v1101 = vrot.slane %v1092, %v1100
          %v1104 = vadd.f32 %v1088, %v1097
          %v1105 = vadd.f32 %v1089, %v1101
          %s1106 = sld [smem:[#allocation10 + $0x51]]
          %v1107 = vstv %s1106
          %v1108 = vmul.f32 %v1107, %v512
          %v1109 = vmul.f32 %v1107, %v513
          %v1110 = vadd.f32 %v1104, %v1108
          %v1111 = vadd.f32 %v1105, %v1109
          %s1112 = sld [smem:[#allocation10 + $0x58]]
          %v1113 = vstv %s1112
          %v1114 = vmul.f32 %v1113, %v520
          %v1115 = vmul.f32 %v1113, %v521
          %v1116 = vadd.f32 %v1110, %v1114
          %v1117 = vadd.f32 %v1111, %v1115
          %s1118 = sld [smem:[#allocation10 + $0x5f]]
          %v1119 = vstv %s1118
          %v1120 = vmul.f32 %v1119, %v528
          %v1121 = vmul.f32 %v1119, %v529
          %v1122 = vadd.f32 %v1116, %v1120
          %v1123 = vadd.f32 %v1117, %v1121
          %1124 = vrot.lane.b32.xlu0 %v1122, 127
          %v1125 = vpop.permute.xlu0 %1124
          %1126 = vrot.lane.b32.xlu0 %v1123, 127
          %v1127 = vpop.permute.xlu0 %1126
          %vm1128 = vcmp.lt.s32.totalorder %v343, 127
          %v1129 = vsel %vm1128, %v1125, %v1127
          %v1130 = vsel %vm1128, %v1127, %v1125
          %s1131 = scalar_lea.vmem [#allocation8], 19
          %v1132 = vld [vmem:[%s1131] ss:$8 sm:$0x3]
          %v1134 = vlaneseq
          %v1135 = vshrl.u32 %v1134, 7
          %v1136 = vsub.s32 0, %v1135
          %v1137 = vrot.slane %v1132, %v1136
          %v1138 = vlaneseq
          %v1139 = vshrl.u32 %v1138, 7
          %v1140 = vsub.s32 1, %v1139
          %v1141 = vrot.slane %v1132, %v1140
          %v1144 = vmul.f32 %v1129, %v1137
          %v1145 = vmul.f32 %v1130, %v1141
          %v1146 = vadd.f32 %v1018, %v1144
          %v1147 = vadd.f32 %v1019, %v1145
          %s1148 = sld [smem:[#allocation10 + $0x5]]
          %v1149 = vstv %s1148
          %v1150 = vmul.f32 %v1149, %v359
          %v1151 = vmul.f32 %v1149, %v360
          %v1152 = vadd.f32 %v1150, 0.0
          %v1153 = vadd.f32 %v1151, 0.0
          %s1154 = sld [smem:[#allocation10 + $0xc]]
          %v1155 = vstv %s1154
          %v1156 = vmul.f32 %v1155, %v381
          %v1157 = vmul.f32 %v1155, %v382
          %v1158 = vadd.f32 %v1152, %v1156
          %v1159 = vadd.f32 %v1153, %v1157
          %s1160 = sld [smem:[#allocation10 + $0x13]]
          %v1161 = vstv %s1160
          %v1162 = vmul.f32 %v1161, %v403
          %v1163 = vmul.f32 %v1161, %v404
          %v1164 = vadd.f32 %v1158, %v1162
          %v1165 = vadd.f32 %v1159, %v1163
          %s1166 = sld [smem:[#allocation10 + $0x1a]]
          %v1167 = vstv %s1166
          %v1168 = vmul.f32 %v1167, %v325
          %v1170 = vlaneseq
          %v1171 = vshrl.u32 %v1170, 7
          %v1172 = vsub.s32 0, %v1171
          %v1173 = vrot.slane %v1168, %v1172
          %v1174 = vlaneseq
          %v1175 = vshrl.u32 %v1174, 7
          %v1176 = vsub.s32 1, %v1175
          %v1177 = vrot.slane %v1168, %v1176
          %v1180 = vadd.f32 %v1164, %v1173
          %v1181 = vadd.f32 %v1165, %v1177
          %s1182 = sld [smem:[#allocation10 + $0x21]]
          %v1183 = vstv %s1182
          %v1184 = vmul.f32 %v1183, %v425
          %v1185 = vmul.f32 %v1183, %v426
          %v1186 = vadd.f32 %v1180, %v1184
          %v1187 = vadd.f32 %v1181, %v1185
          %s1188 = sld [smem:[#allocation10 + $0x28]]
          %v1189 = vstv %s1188
          %v1190 = vmul.f32 %v1189, %v447
          %v1191 = vmul.f32 %v1189, %v448
          %v1192 = vadd.f32 %v1186, %v1190
          %v1193 = vadd.f32 %v1187, %v1191
          %s1194 = sld [smem:[#allocation10 + $0x2f]]
          %v1195 = vstv %s1194
          %v1196 = vmul.f32 %v1195, %v469
          %v1197 = vmul.f32 %v1195, %v470
          %v1198 = vadd.f32 %v1192, %v1196
          %v1199 = vadd.f32 %v1193, %v1197
          %s1200 = sld [smem:[#allocation10 + $0x36]]
          %v1201 = vstv %s1200
          %v1202 = vmul.f32 %v1201, %v488
          %v1203 = vmul.f32 %v1201, %v489
          %v1204 = vadd.f32 %v1198, %v1202
          %v1205 = vadd.f32 %v1199, %v1203
          %s1206 = sld [smem:[#allocation10 + $0x3d]]
          %v1207 = vstv %s1206
          %v1208 = vmul.f32 %v1207, %v496
          %v1209 = vmul.f32 %v1207, %v497
          %v1210 = vadd.f32 %v1204, %v1208
          %v1211 = vadd.f32 %v1205, %v1209
          %s1212 = sld [smem:[#allocation10 + $0x44]]
          %v1213 = vstv %s1212
          %v1214 = vmul.f32 %v1213, %v504
          %v1215 = vmul.f32 %v1213, %v505
          %v1216 = vadd.f32 %v1210, %v1214
          %v1217 = vadd.f32 %v1211, %v1215
          %s1218 = sld [smem:[#allocation10 + $0x4b]]
          %v1219 = vstv %s1218
          %v1220 = vmul.f32 %v1219, %v326
          %v1222 = vlaneseq
          %v1223 = vshrl.u32 %v1222, 7
          %v1224 = vsub.s32 0, %v1223
          %v1225 = vrot.slane %v1220, %v1224
          %v1226 = vlaneseq
          %v1227 = vshrl.u32 %v1226, 7
          %v1228 = vsub.s32 1, %v1227
          %v1229 = vrot.slane %v1220, %v1228
          %v1232 = vadd.f32 %v1216, %v1225
          %v1233 = vadd.f32 %v1217, %v1229
          %s1234 = sld [smem:[#allocation10 + $0x52]]
          %v1235 = vstv %s1234
          %v1236 = vmul.f32 %v1235, %v512
          %v1237 = vmul.f32 %v1235, %v513
          %v1238 = vadd.f32 %v1232, %v1236
          %v1239 = vadd.f32 %v1233, %v1237
          %s1240 = sld [smem:[#allocation10 + $0x59]]
          %v1241 = vstv %s1240
          %v1242 = vmul.f32 %v1241, %v520
          %v1243 = vmul.f32 %v1241, %v521
          %v1244 = vadd.f32 %v1238, %v1242
          %v1245 = vadd.f32 %v1239, %v1243
          %s1246 = sld [smem:[#allocation10 + $0x60]]
          %v1247 = vstv %s1246
          %v1248 = vmul.f32 %v1247, %v528
          %v1249 = vmul.f32 %v1247, %v529
          %v1250 = vadd.f32 %v1244, %v1248
          %v1251 = vadd.f32 %v1245, %v1249
          %1252 = vrot.lane.b32.xlu0 %v1250, 126
          %v1253 = vpop.permute.xlu0 %1252
          %1254 = vrot.lane.b32.xlu0 %v1251, 126
          %v1255 = vpop.permute.xlu0 %1254
          %vm1256 = vcmp.lt.s32.totalorder %v343, 126
          %v1257 = vsel %vm1256, %v1253, %v1255
          %v1258 = vsel %vm1256, %v1255, %v1253
          %s1259 = scalar_lea.vmem [#allocation8], 20
          %v1260 = vld [vmem:[%s1259] ss:$8 sm:$0x3]
          %v1262 = vlaneseq
          %v1263 = vshrl.u32 %v1262, 7
          %v1264 = vsub.s32 0, %v1263
          %v1265 = vrot.slane %v1260, %v1264
          %v1266 = vlaneseq
          %v1267 = vshrl.u32 %v1266, 7
          %v1268 = vsub.s32 1, %v1267
          %v1269 = vrot.slane %v1260, %v1268
          %v1272 = vmul.f32 %v1257, %v1265
          %v1273 = vmul.f32 %v1258, %v1269
          %v1274 = vadd.f32 %v1146, %v1272
          %v1275 = vadd.f32 %v1147, %v1273
          %s1276 = sld [smem:[#allocation10 + $0x6]]
          %v1277 = vstv %s1276
          %v1278 = vmul.f32 %v1277, %v359
          %v1279 = vmul.f32 %v1277, %v360
          %v1280 = vadd.f32 %v1278, 0.0
          %v1281 = vadd.f32 %v1279, 0.0
          %s1282 = sld [smem:[#allocation10 + $0xd]]
          %v1283 = vstv %s1282
          %v1284 = vmul.f32 %v1283, %v381
          %v1285 = vmul.f32 %v1283, %v382
          %v1286 = vadd.f32 %v1280, %v1284
          %v1287 = vadd.f32 %v1281, %v1285
          %s1288 = sld [smem:[#allocation10 + $0x14]]
          %v1289 = vstv %s1288
          %v1290 = vmul.f32 %v1289, %v403
          %v1291 = vmul.f32 %v1289, %v404
          %v1292 = vadd.f32 %v1286, %v1290
          %v1293 = vadd.f32 %v1287, %v1291
          %s1294 = sld [smem:[#allocation10 + $0x1b]]
          %v1295 = vstv %s1294
          %v1296 = vmul.f32 %v1295, %v325
          %v1298 = vlaneseq
          %v1299 = vshrl.u32 %v1298, 7
          %v1300 = vsub.s32 0, %v1299
          %v1301 = vrot.slane %v1296, %v1300
          %v1302 = vlaneseq
          %v1303 = vshrl.u32 %v1302, 7
          %v1304 = vsub.s32 1, %v1303
          %v1305 = vrot.slane %v1296, %v1304
          %v1308 = vadd.f32 %v1292, %v1301
          %v1309 = vadd.f32 %v1293, %v1305
          %s1310 = sld [smem:[#allocation10 + $0x22]]
          %v1311 = vstv %s1310
          %v1312 = vmul.f32 %v1311, %v425
          %v1313 = vmul.f32 %v1311, %v426
          %v1314 = vadd.f32 %v1308, %v1312
          %v1315 = vadd.f32 %v1309, %v1313
          %s1316 = sld [smem:[#allocation10 + $0x29]]
          %v1317 = vstv %s1316
          %v1318 = vmul.f32 %v1317, %v447
          %v1319 = vmul.f32 %v1317, %v448
          %v1320 = vadd.f32 %v1314, %v1318
          %v1321 = vadd.f32 %v1315, %v1319
          %s1322 = sld [smem:[#allocation10 + $0x30]]
          %v1323 = vstv %s1322
          %v1324 = vmul.f32 %v1323, %v469
          %v1325 = vmul.f32 %v1323, %v470
          %v1326 = vadd.f32 %v1320, %v1324
          %v1327 = vadd.f32 %v1321, %v1325
          %s1328 = sld [smem:[#allocation10 + $0x37]]
          %v1329 = vstv %s1328
          %v1330 = vmul.f32 %v1329, %v488
          %v1331 = vmul.f32 %v1329, %v489
          %v1332 = vadd.f32 %v1326, %v1330
          %v1333 = vadd.f32 %v1327, %v1331
          %s1334 = sld [smem:[#allocation10 + $0x3e]]
          %v1335 = vstv %s1334
          %v1336 = vmul.f32 %v1335, %v496
          %v1337 = vmul.f32 %v1335, %v497
          %v1338 = vadd.f32 %v1332, %v1336
          %v1339 = vadd.f32 %v1333, %v1337
          %s1340 = sld [smem:[#allocation10 + $0x45]]
          %v1341 = vstv %s1340
          %v1342 = vmul.f32 %v1341, %v504
          %v1343 = vmul.f32 %v1341, %v505
          %v1344 = vadd.f32 %v1338, %v1342
          %v1345 = vadd.f32 %v1339, %v1343
          %s1346 = sld [smem:[#allocation10 + $0x4c]]
          %v1347 = vstv %s1346
          %v1348 = vmul.f32 %v1347, %v326
          %v1350 = vlaneseq
          %v1351 = vshrl.u32 %v1350, 7
          %v1352 = vsub.s32 0, %v1351
          %v1353 = vrot.slane %v1348, %v1352
          %v1354 = vlaneseq
          %v1355 = vshrl.u32 %v1354, 7
          %v1356 = vsub.s32 1, %v1355
          %v1357 = vrot.slane %v1348, %v1356
          %v1360 = vadd.f32 %v1344, %v1353
          %v1361 = vadd.f32 %v1345, %v1357
          %s1362 = sld [smem:[#allocation10 + $0x53]]
          %v1363 = vstv %s1362
          %v1364 = vmul.f32 %v1363, %v512
          %v1365 = vmul.f32 %v1363, %v513
          %v1366 = vadd.f32 %v1360, %v1364
          %v1367 = vadd.f32 %v1361, %v1365
          %s1368 = sld [smem:[#allocation10 + $0x5a]]
          %v1369 = vstv %s1368
          %v1370 = vmul.f32 %v1369, %v520
          %v1371 = vmul.f32 %v1369, %v521
          %v1372 = vadd.f32 %v1366, %v1370
          %v1373 = vadd.f32 %v1367, %v1371
          %s1374 = sld [smem:[#allocation10 + $0x61]]
          %v1375 = vstv %s1374
          %v1376 = vmul.f32 %v1375, %v528
          %v1377 = vmul.f32 %v1375, %v529
          %v1378 = vadd.f32 %v1372, %v1376
          %v1379 = vadd.f32 %v1373, %v1377
          %1380 = vrot.lane.b32.xlu0 %v1378, 125
          %v1381 = vpop.permute.xlu0 %1380
          %1382 = vrot.lane.b32.xlu0 %v1379, 125
          %v1383 = vpop.permute.xlu0 %1382
          %vm1384 = vcmp.lt.s32.totalorder %v343, 125
          %v1385 = vsel %vm1384, %v1381, %v1383
          %v1386 = vsel %vm1384, %v1383, %v1381
          %s1387 = scalar_lea.vmem [#allocation8], 21
          %v1388 = vld [vmem:[%s1387] ss:$8 sm:$0x3]
          %v1390 = vlaneseq
          %v1391 = vshrl.u32 %v1390, 7
          %v1392 = vsub.s32 0, %v1391
          %v1393 = vrot.slane %v1388, %v1392
          %v1394 = vlaneseq
          %v1395 = vshrl.u32 %v1394, 7
          %v1396 = vsub.s32 1, %v1395
          %v1397 = vrot.slane %v1388, %v1396
          %v1400 = vmul.f32 %v1385, %v1393
          %v1401 = vmul.f32 %v1386, %v1397
          %v1402 = vadd.f32 %v1274, %v1400
          %v1403 = vadd.f32 %v1275, %v1401
          %v1404 = vsub.f32 0.0, %v1402
          %v1405 = vsub.f32 0.0, %v1403
          %v1406 = vmul.f32 %v1404, 1.442695
          %v1407 = vpow.pop %v1406
          %v1408 = vmul.f32 %v1405, 1.442695
          %v1409 = vpow.pop %v1408
          %v1410 = vadd.f32 %v1407, 1.0
          %v1411 = vadd.f32 %v1409, 1.0
          %v1412 = vrcp.pop %v1410
          %v1413 = vmul.f32 1.0, %v1412
          %v1414 = vrcp.pop %v1411
          %v1415 = vmul.f32 1.0, %v1414
          %v1418 = vcombine.low %v1413, %v1415
          %v1420 = vunpack.c.l.s4 1966171168
          %v1421 = vunpack.c.0.s8 %v1420
          %v1422 = vlaneseq
          %v1423 = vshrl.u32 %v1422, 7
          %v1424 = vsub.s32 %v1421, %v1423
          %v1425 = vrot.slane %v1418, %v1424
          %v1427 = vunpack.c.l.s4 1966171168
          %v1428 = vunpack.c.0.s8 %v1427
          %v1429 = vlaneseq
          %v1430 = vshrl.u32 %v1429, 7
          %v1431 = vsub.s32 %v1428, %v1430
          %v1432 = vrot.slane %v1425, %v1431
          %1434 = vst.msk [vmem:[%s231] sm:$0x3] %vm284, %v1432
        $region52: #{tpu_custom_call.1} parent=31 // pred_fallthru
          _
        %s1435 = sand.u32 %s112, 1
        %s1436 = scalar_lea.sflag [#allocation6], %s1435
        %s1437 = sand.u32 %s112, 1
        %s1438 = smul.addr %s1437, 2
        %s1439 = scalar_lea.vmem [#allocation11], %s1438
        // Predicated region
        $region53: #{tpu_custom_call.1} parent=31 // pred_check
          %p1440 = pneg %p122
        $region54: #{tpu_custom_call.1} parent=31 // pred_check_branch
          %1442 = sbr.rel (%p1440) target = $region56
        $region55: #{tpu_custom_call.1} parent=31 // pred_region
          %s1444 = ssub.s32 32, 32
          %1445 = vsyncadd %s1436, %s1444
          %s1446 = smul.addr %s26, 2
          %s1447 = smul.addr %s1446, 16
          %s1448 = scalar_lea.hbm %s3, %s1447
          %s1450 = sshll.u32 %s1439, 4
          %s1451 = int_to_ptr.vmem [resolvable:$true] %s1450
          %1453 = dma.vmem_to_hbm [thread:$0]  %s1451, 32, %s1448, %s1436
        $region56: #{tpu_custom_call.1} parent=31 // pred_fallthru
          _
      $region32: #{tpu_custom_call.1} parent=5 // pred_fallthru
        _
      %p1454 = scmp.le.s32.totalorder 2, %s17
      // Predicated region
      $region57: #{tpu_custom_call.1} parent=5 // pred_check
        %p1455 = pneg %p1454
      $region58: #{tpu_custom_call.1} parent=5 // pred_check_branch
        %1457 = sbr.rel (%p1455) target = $region60
      $region59: #{tpu_custom_call.1} parent=5 // pred_region
        %s1458 = ssub.s32 %s17, 2
        // Predicated region
        $region61: #{tpu_custom_call.1} parent=59 // pred_check
          %p1459 = pneg %p128
        $region62: #{tpu_custom_call.1} parent=59 // pred_check_branch
          %1461 = sbr.rel (%p1459) target = $region64
        $region63: #{tpu_custom_call.1} parent=59 // pred_region
          %s1462 = sand.u32 %s113, 1
          %s1463 = scalar_lea.sflag [#allocation6], %s1462
          %s1464 = sand.u32 %s113, 1
          %s1465 = smul.addr %s1464, 2
          %s1466 = scalar_lea.vmem [#allocation11], %s1465
          %1467 = dma.done %s1463, 32
        $region64: #{tpu_custom_call.1} parent=59 // pred_fallthru
          _
      $region60: #{tpu_custom_call.1} parent=5 // pred_fallthru
        _
    $region6: #{tpu_custom_call.1} parent=1 // loop_footer
      %s21 = sadd.s32 1, %s17
    $region7: #{tpu_custom_call.1} parent=1 // loop_footer_branch
      %16 = sbr.rel target = $region3
    $region8: #{tpu_custom_call.1} parent=1 // loop_exit
      _
    %1468 = vsyncpa [#allocation5], 1
    %s1469 = scalar_lea.sflag [#allocation5], 1
    %1470 = vsyncpa %s1469, 1
    %1471 = vsyncpa [#allocation9], 1
    %1472 = vsyncpa [#allocation6], 1
    %s1473 = scalar_lea.sflag [#allocation6], 1
    %1474 = vsyncpa %s1473, 1
    %1475 = vsyncpa [#allocation7], 1
    %s1476 = scalar_lea.sflag [#allocation7], 1
    %1477 = vsyncpa %s1476, 1

</llo_original>
